<compile_context>
chip_gen: v7x
topology: tpu7x:2x2x1
jax: 0.10.0
libtpu: 0.0.40
codegen_flags: <defaults>
</compile_context>

<pallas_src>
import jax
import jax.numpy as jnp
from jax.experimental import pallas as pl
from jax.experimental.pallas import tpu as pltpu


LANE = 128      # vreg lane width
SUBLANE = 8     # vreg sublane width (f32)


def _round_up(n, m):
    return ((n + m - 1) // m) * m


def lstm_classifier_kernel(
    x_ref,      # (Tc*Bp, D)   time-major input chunk, batch zero-padded to Bp (f32)
    wih_ref,    # (D, 4H)      input->gates weight, gate order i|f|g|o (mm dtype)
    whh_ref,    # (H, 4H)      hidden->gates weight (mm dtype)
    b_ref,      # (1, 4H)      b_ih + b_hh (f32)
    wc_ref,     # (H, Cp)      folded classifier weight  W1^T @ W2^T  (mm dtype)
    bc_ref,     # (1, Cp)      folded classifier bias    b1 @ W2^T + b2  (f32)
    out_ref,    # (Bp, Cp)     padded logits (f32)
    h_ref,      # (Bp, H)      persistent hidden state scratch (f32)
    c_ref,      # (Bp, H)      persistent cell state scratch (f32)
    gx_ref,     # (Tc*Bp, 4H)  f32 scratch: hoisted input projection for this chunk
):
    t_chunk = pl.program_id(0)
    Bp = out_ref.shape[0]
    H = whh_ref.shape[0]
    Tc = x_ref.shape[0] // Bp
    f32 = jnp.float32
    mmdt = whh_ref.dtype          # matmul operand dtype (f32 or bf16)

    @pl.when(t_chunk == 0)
    def _init():
        h_ref[...] = jnp.zeros_like(h_ref)
        c_ref[...] = jnp.zeros_like(c_ref)

    # ---- Hoisted (non-recurrent) input projection: one MXU call per chunk ----
    gx_ref[...] = (
        jnp.dot(x_ref[...].astype(mmdt), wih_ref[...], preferred_element_type=f32)
        + b_ref[...]
    )

    # ---- Serial LSTM recurrence over this chunk (gate order: i, f, g, o) ----
    def step(tt, carry):
        h_prev, c_prev = carry
        row = pl.multiple_of(tt * Bp, Bp)   # Bp is a multiple of the sublane width
        # One dense (Bp, 4H) gate tile; MXU reads whh straight from VMEM.
        gates = gx_ref[pl.ds(row, Bp), :] + jnp.dot(
            h_prev.astype(mmdt), whh_ref[...], preferred_element_type=f32)
        # One full-vreg sigmoid + one full-vreg tanh (EUP), then 32-lane slices.
        sig = jax.nn.sigmoid(gates)
        tnh = jnp.tanh(gates)
        i_g = sig[:, 0 * H:1 * H]
        f_g = sig[:, 1 * H:2 * H]
        g_g = tnh[:, 2 * H:3 * H]
        o_g = sig[:, 3 * H:4 * H]
        c_new = f_g * c_prev + i_g * g_g
        h_new = o_g * jnp.tanh(c_new)
        return h_new, c_new

    h_last, c_last = jax.lax.fori_loop(
        0, Tc, step, (h_ref[...], c_ref[...]), unroll=min(Tc, 8))
    h_ref[...] = h_last
    c_ref[...] = c_last

    # ---- Folded classifier, only on the last time chunk ----
    @pl.when(t_chunk == pl.num_programs(0) - 1)
    def _finalize():
        logits = jnp.dot(h_last.astype(mmdt), wc_ref[...],
                         preferred_element_type=f32) + bc_ref[...]
        out_ref[...] = logits.astype(out_ref.dtype)


def _pack_params(params, *, H, C, Cp, matmul_dtype):
    """Transpose / fold / pad PyTorch-layout params into the kernel layout."""
    f32 = jnp.float32
    w_ih_t = params["w_ih"].T.astype(matmul_dtype)        # (D, 4H), gates dense i|f|g|o
    w_hh_t = params["w_hh"].T.astype(matmul_dtype)        # (H, 4H)
    b = (params["b_ih"] + params["b_hh"]).astype(f32).reshape(1, 4 * H)

    # Fold Linear(H,H) -> Linear(H,C): no activation in between in the module.
    w_cls = params["w1"].T.astype(f32) @ params["w2"].T.astype(f32)        # (H, C)
    b_cls = params["b1"].astype(f32) @ params["w2"].T.astype(f32) + params["b2"].astype(f32)
    w_cls_p = jnp.zeros((H, Cp), f32).at[:, :C].set(w_cls).astype(matmul_dtype)
    b_cls_p = jnp.zeros((1, Cp), f32).at[0, :C].set(b_cls)

    return dict(w_ih_t=w_ih_t, w_hh_t=w_hh_t, b=b, w_cls=w_cls_p, b_cls=b_cls_p)


def lstm_classifier_forward(x, params, hidden_size=32, n_classes=4, *,
                            time_chunk=16, matmul_dtype=jnp.float32):
    """x: (B, T, D) float32. params: PyTorch-layout dict (see init_params).

    matmul_dtype=jnp.bfloat16 enables bf16 MXU operands (v6e/v7x); states,
    accumulation and the c/h update stay f32. Default f32 = exact parity.
    """
    B, T, D = x.shape
    H, C = hidden_size, n_classes
    G = 4 * H
    Bp = _round_up(max(B, SUBLANE), SUBLANE)   # pad batch to the sublane width
    Cp = _round_up(C, LANE)                    # lane-dense output store

    # Largest time-chunk that divides T (bounds VMEM and the in-kernel unroll).
    Tc = max(tc for tc in range(1, min(T, time_chunk) + 1) if T % tc == 0)
    n_chunks = T // Tc

    kp = _pack_params(params, H=H, C=C, Cp=Cp, matmul_dtype=matmul_dtype)

    # Time-major + batch pad in a single fused XLA copy; the 2-D reshape of the
    # contiguous result is free metadata.
    x_tm = jnp.zeros((T, Bp, D), jnp.float32).at[:, :B, :].set(jnp.swapaxes(x, 0, 1))
    x2d = x_tm.reshape(T * Bp, D)

    const = lambda t: (0, 0)

    out = pl.pallas_call(
        lstm_classifier_kernel,
        out_shape=jax.ShapeDtypeStruct((Bp, Cp), jnp.float32),
        grid_spec=pltpu.PrefetchScalarGridSpec(
            num_scalar_prefetch=0,
            grid=(n_chunks,),                        # serial recurrence over time chunks
            in_specs=[
                pl.BlockSpec((Tc * Bp, D), lambda t: (t, 0)),   # x: one time chunk
                pl.BlockSpec((D, G), const),
                pl.BlockSpec((H, G), const),
                pl.BlockSpec((1, G), const),
                pl.BlockSpec((H, Cp), const),
                pl.BlockSpec((1, Cp), const),
            ],
            out_specs=pl.BlockSpec((Bp, Cp), const),
            scratch_shapes=[
                pltpu.VMEM((Bp, H), jnp.float32),        # h (persists across chunks)
                pltpu.VMEM((Bp, H), jnp.float32),        # c (persists across chunks)
                pltpu.VMEM((Tc * Bp, G), jnp.float32),   # hoisted x-projection (1 chunk)
            ],
        ),
        compiler_params=pltpu.CompilerParams(
            dimension_semantics=("arbitrary",),
        ),
    )(x2d, kp["w_ih_t"], kp["w_hh_t"], kp["b"], kp["w_cls"], kp["b_cls"])

    return out[:B, :C]


def init_params(key, in_dim, hidden_size=32, n_classes=4):
    """Deterministic synthetic init in PyTorch layout (uniform +-1/sqrt(H))."""
    keys = jax.random.split(key, 8)
    H, D, C = hidden_size, in_dim, n_classes
    s = 1.0 / jnp.sqrt(H)
    u = lambda k, shape: jax.random.uniform(k, shape, jnp.float32, -s, s)
    return {
        "w_ih": u(keys[0], (4 * H, D)),
        "w_hh": u(keys[1], (4 * H, H)),
        "b_ih": u(keys[2], (4 * H,)),
        "b_hh": u(keys[3], (4 * H,)),
        "w1":   u(keys[4], (H, H)),
        "b1":   u(keys[5], (H,)),
        "w2":   u(keys[6], (C, H)),
        "b2":   u(keys[7], (C,)),
    }


def reference_forward(x, params):
    """Pure-JAX reference of the same forward pass (PyTorch semantics)."""
    B, T, _ = x.shape
    H = params["w_hh"].shape[1]
    w_ih_t = params["w_ih"].T
    w_hh_t = params["w_hh"].T
    b = params["b_ih"] + params["b_hh"]
    h = jnp.zeros((B, H), jnp.float32)
    c = jnp.zeros((B, H), jnp.float32)
    for t in range(T):
        gates = x[:, t, :] @ w_ih_t + h @ w_hh_t + b
        i = jax.nn.sigmoid(gates[:, 0 * H:1 * H])
        f = jax.nn.sigmoid(gates[:, 1 * H:2 * H])
        g = jnp.tanh(gates[:, 2 * H:3 * H])
        o = jax.nn.sigmoid(gates[:, 3 * H:4 * H])
        c = f * c + i * g
        h = o * jnp.tanh(c)
    z = h @ params["w1"].T + params["b1"]
    return z @ params["w2"].T + params["b2"]


if __name__ == "__main__":
    B, T, D, H, C = 2, 8, 16, 32, 4

    key = jax.random.PRNGKey(0)
    kx, kp = jax.random.split(key)
    x = jax.random.normal(kx, (B, T, D), jnp.float32)
    params = init_params(kp, in_dim=D, hidden_size=H, n_classes=C)

    ref = reference_forward(x, params)

    # Exact-parity path (f32 matmul operands; default, also the v5e config).
    out = lstm_classifier_forward(x, params, hidden_size=H, n_classes=C)
    out = jax.block_until_ready(out)
    assert out.shape == (B, C)
    assert jnp.allclose(out, ref, atol=1e-4, rtol=1e-4), (out, ref)

    # bf16-operand path (v6e/v7x MXU-native); loose tolerance since operands are
    # rounded to bf16 while accumulation / state updates stay f32.
    out_bf16 = lstm_classifier_forward(x, params, hidden_size=H, n_classes=C,
                                       matmul_dtype=jnp.bfloat16)
    out_bf16 = jax.block_until_ready(out_bf16)
    assert jnp.allclose(out_bf16, ref, atol=1e-1, rtol=1e-1), (out_bf16, ref)

    print("KERNEL_OK")
</pallas_src>

<mosaic_0001>
module attributes {stable_mosaic.version = 11 : i64} {
  func.func @lstm_classifier_kernel(%arg0: i32, %arg1: memref<64x16xf32, #tpu.memory_space<vmem>>, %arg2: memref<16x128xf32, #tpu.memory_space<vmem>>, %arg3: memref<32x128xf32, #tpu.memory_space<vmem>>, %arg4: memref<1x128xf32, #tpu.memory_space<vmem>>, %arg5: memref<32x128xf32, #tpu.memory_space<vmem>>, %arg6: memref<1x128xf32, #tpu.memory_space<vmem>>, %arg7: memref<8x128xf32, #tpu.memory_space<vmem>>, %arg8: memref<8x32xf32, #tpu.memory_space<vmem>>, %arg9: memref<8x32xf32, #tpu.memory_space<vmem>>, %arg10: memref<64x128xf32, #tpu.memory_space<vmem>>) attributes {dimension_semantics = [#tpu.dimension_semantics<arbitrary>], iteration_bounds = array<i64: 1>, scalar_prefetch = 0 : i64, scratch_operands = 3 : i64, tpu.core_type = #tpu.core_type<tc>, window_params = [{transform_indices = @transform_0, window_bounds = array<i64: 64, 16>}, {pipeline_mode = #tpu.pipeline_mode<synchronous>, transform_indices = @transform_1, window_bounds = array<i64: 16, 128>}, {pipeline_mode = #tpu.pipeline_mode<synchronous>, transform_indices = @transform_2, window_bounds = array<i64: 32, 128>}, {pipeline_mode = #tpu.pipeline_mode<synchronous>, transform_indices = @transform_3, window_bounds = array<i64: 1, 128>}, {pipeline_mode = #tpu.pipeline_mode<synchronous>, transform_indices = @transform_4, window_bounds = array<i64: 32, 128>}, {pipeline_mode = #tpu.pipeline_mode<synchronous>, transform_indices = @transform_5, window_bounds = array<i64: 1, 128>}, {pipeline_mode = #tpu.pipeline_mode<synchronous>, transform_indices = @transform_6, window_bounds = array<i64: 8, 128>}]} {
    %c0_i32 = arith.constant 0 : i32
    %0 = arith.cmpi eq, %arg0, %c0_i32 : i32
    %1 = arith.extui %0 : i1 to i32
    %c0_i32_0 = arith.constant 0 : i32
    %2 = arith.cmpi ne, %1, %c0_i32_0 : i32
    scf.if %2 {
      %cst_67 = arith.constant 0.000000e+00 : f32
      %193 = vector.broadcast %cst_67 : f32 to vector<8x32xf32>
      %c0_68 = arith.constant 0 : index
      %c0_69 = arith.constant 0 : index
      %194 = vector.load %arg8[%c0_68, %c0_69] : memref<8x32xf32, #tpu.memory_space<vmem>>, vector<8x32xf32>
      tpu.vector_store %arg8[%c0_68, %c0_69], %193 {strides = array<i32>} : memref<8x32xf32, #tpu.memory_space<vmem>>, vector<8x32xf32>,
      %cst_70 = arith.constant 0.000000e+00 : f32
      %195 = vector.broadcast %cst_70 : f32 to vector<8x32xf32>
      %c0_71 = arith.constant 0 : index
      %c0_72 = arith.constant 0 : index
      %196 = vector.load %arg9[%c0_71, %c0_72] : memref<8x32xf32, #tpu.memory_space<vmem>>, vector<8x32xf32>
      tpu.vector_store %arg9[%c0_71, %c0_72], %195 {strides = array<i32>} : memref<8x32xf32, #tpu.memory_space<vmem>>, vector<8x32xf32>,
    } else {
    }
    %c0 = arith.constant 0 : index
    %c0_1 = arith.constant 0 : index
    %3 = vector.load %arg1[%c0, %c0_1] : memref<64x16xf32, #tpu.memory_space<vmem>>, vector<64x16xf32>
    %c0_2 = arith.constant 0 : index
    %c0_3 = arith.constant 0 : index
    %4 = vector.load %arg2[%c0_2, %c0_3] : memref<16x128xf32, #tpu.memory_space<vmem>>, vector<16x128xf32>
    %cst = arith.constant dense<0.000000e+00> : vector<64x128xf32>
    %5 = tpu.matmul %3, %4, %cst {dimension_numbers = #tpu.dot_dimension_numbers<[1], [0], [0], [1], [0, 0, 1, 1], [], []>} : vector<64x16xf32>, vector<16x128xf32>, vector<64x128xf32> -> vector<64x128xf32>
    %c0_4 = arith.constant 0 : index
    %c0_5 = arith.constant 0 : index
    %6 = vector.load %arg4[%c0_4, %c0_5] : memref<1x128xf32, #tpu.memory_space<vmem>>, vector<1x128xf32>
    %7 = vector.broadcast %6 : vector<1x128xf32> to vector<64x128xf32>
    %8 = arith.addf %5, %7 : vector<64x128xf32>
    %c0_6 = arith.constant 0 : index
    %c0_7 = arith.constant 0 : index
    %9 = vector.load %arg10[%c0_6, %c0_7] : memref<64x128xf32, #tpu.memory_space<vmem>>, vector<64x128xf32>
    tpu.vector_store %arg10[%c0_6, %c0_7], %8 {strides = array<i32>} : memref<64x128xf32, #tpu.memory_space<vmem>>, vector<64x128xf32>,
    %c0_8 = arith.constant 0 : index
    %c0_9 = arith.constant 0 : index
    %10 = vector.load %arg8[%c0_8, %c0_9] : memref<8x32xf32, #tpu.memory_space<vmem>>, vector<8x32xf32>
    %c0_10 = arith.constant 0 : index
    %c0_11 = arith.constant 0 : index
    %11 = vector.load %arg9[%c0_10, %c0_11] : memref<8x32xf32, #tpu.memory_space<vmem>>, vector<8x32xf32>
    %c0_i32_12 = arith.constant 0 : i32
    %c8_i32 = arith.constant 8 : i32
    %12 = arith.muli %c0_i32_12, %c8_i32 : i32
    %13 = tpu.assume_multiple %12, 8 : i32
    %14 = arith.index_cast %13 : i32 to index
    %c0_13 = arith.constant 0 : index
    %15 = vector.load %arg10[%14, %c0_13] : memref<64x128xf32, #tpu.memory_space<vmem>>, vector<8x128xf32>
    %c0_14 = arith.constant 0 : index
    %c0_15 = arith.constant 0 : index
    %16 = vector.load %arg3[%c0_14, %c0_15] : memref<32x128xf32, #tpu.memory_space<vmem>>, vector<32x128xf32>
    %cst_16 = arith.constant dense<0.000000e+00> : vector<8x128xf32>
    %17 = tpu.matmul %10, %16, %cst_16 {dimension_numbers = #tpu.dot_dimension_numbers<[1], [0], [0], [1], [0, 0, 1, 1], [], []>} : vector<8x32xf32>, vector<32x128xf32>, vector<8x128xf32> -> vector<8x128xf32>
    %18 = arith.addf %15, %17 : vector<8x128xf32>
    %19 = arith.negf %18 : vector<8x128xf32>
    %20 = math.exp %19 : vector<8x128xf32>
    %cst_17 = arith.constant 1.000000e+00 : f32
    %21 = vector.broadcast %cst_17 : f32 to vector<8x128xf32>
    %22 = arith.addf %21, %20 : vector<8x128xf32>
    %23 = arith.divf %21, %22 : vector<8x128xf32>
    %24 = math.tanh %18 : vector<8x128xf32>
    %25 = vector.extract_strided_slice %23 {offsets = [0, 0], sizes = [8, 32], strides = [1, 1]} : vector<8x128xf32> to vector<8x32xf32>
    %26 = vector.extract_strided_slice %23 {offsets = [0, 32], sizes = [8, 32], strides = [1, 1]} : vector<8x128xf32> to vector<8x32xf32>
    %27 = vector.extract_strided_slice %24 {offsets = [0, 64], sizes = [8, 32], strides = [1, 1]} : vector<8x128xf32> to vector<8x32xf32>
    %28 = vector.extract_strided_slice %23 {offsets = [0, 96], sizes = [8, 32], strides = [1, 1]} : vector<8x128xf32> to vector<8x32xf32>
    %29 = arith.mulf %26, %11 : vector<8x32xf32>
    %30 = arith.mulf %25, %27 : vector<8x32xf32>
    %31 = arith.addf %29, %30 : vector<8x32xf32>
    %32 = math.tanh %31 : vector<8x32xf32>
    %33 = arith.mulf %28, %32 : vector<8x32xf32>
    %c1_i32 = arith.constant 1 : i32
    %c8_i32_18 = arith.constant 8 : i32
    %34 = arith.muli %c1_i32, %c8_i32_18 : i32
    %35 = tpu.assume_multiple %34, 8 : i32
    %36 = arith.index_cast %35 : i32 to index
    %c0_19 = arith.constant 0 : index
    %37 = vector.load %arg10[%36, %c0_19] : memref<64x128xf32, #tpu.memory_space<vmem>>, vector<8x128xf32>
    %c0_20 = arith.constant 0 : index
    %c0_21 = arith.constant 0 : index
    %38 = vector.load %arg3[%c0_20, %c0_21] : memref<32x128xf32, #tpu.memory_space<vmem>>, vector<32x128xf32>
    %cst_22 = arith.constant dense<0.000000e+00> : vector<8x128xf32>
    %39 = tpu.matmul %33, %38, %cst_22 {dimension_numbers = #tpu.dot_dimension_numbers<[1], [0], [0], [1], [0, 0, 1, 1], [], []>} : vector<8x32xf32>, vector<32x128xf32>, vector<8x128xf32> -> vector<8x128xf32>
    %40 = arith.addf %37, %39 : vector<8x128xf32>
    %41 = arith.negf %40 : vector<8x128xf32>
    %42 = math.exp %41 : vector<8x128xf32>
    %cst_23 = arith.constant 1.000000e+00 : f32
    %43 = vector.broadcast %cst_23 : f32 to vector<8x128xf32>
    %44 = arith.addf %43, %42 : vector<8x128xf32>
    %45 = arith.divf %43, %44 : vector<8x128xf32>
    %46 = math.tanh %40 : vector<8x128xf32>
    %47 = vector.extract_strided_slice %45 {offsets = [0, 0], sizes = [8, 32], strides = [1, 1]} : vector<8x128xf32> to vector<8x32xf32>
    %48 = vector.extract_strided_slice %45 {offsets = [0, 32], sizes = [8, 32], strides = [1, 1]} : vector<8x128xf32> to vector<8x32xf32>
    %49 = vector.extract_strided_slice %46 {offsets = [0, 64], sizes = [8, 32], strides = [1, 1]} : vector<8x128xf32> to vector<8x32xf32>
    %50 = vector.extract_strided_slice %45 {offsets = [0, 96], sizes = [8, 32], strides = [1, 1]} : vector<8x128xf32> to vector<8x32xf32>
    %51 = arith.mulf %48, %31 : vector<8x32xf32>
    %52 = arith.mulf %47, %49 : vector<8x32xf32>
    %53 = arith.addf %51, %52 : vector<8x32xf32>
    %54 = math.tanh %53 : vector<8x32xf32>
    %55 = arith.mulf %50, %54 : vector<8x32xf32>
    %c2_i32 = arith.constant 2 : i32
    %c8_i32_24 = arith.constant 8 : i32
    %56 = arith.muli %c2_i32, %c8_i32_24 : i32
    %57 = tpu.assume_multiple %56, 8 : i32
    %58 = arith.index_cast %57 : i32 to index
    %c0_25 = arith.constant 0 : index
    %59 = vector.load %arg10[%58, %c0_25] : memref<64x128xf32, #tpu.memory_space<vmem>>, vector<8x128xf32>
    %c0_26 = arith.constant 0 : index
    %c0_27 = arith.constant 0 : index
    %60 = vector.load %arg3[%c0_26, %c0_27] : memref<32x128xf32, #tpu.memory_space<vmem>>, vector<32x128xf32>
    %cst_28 = arith.constant dense<0.000000e+00> : vector<8x128xf32>
    %61 = tpu.matmul %55, %60, %cst_28 {dimension_numbers = #tpu.dot_dimension_numbers<[1], [0], [0], [1], [0, 0, 1, 1], [], []>} : vector<8x32xf32>, vector<32x128xf32>, vector<8x128xf32> -> vector<8x128xf32>
    %62 = arith.addf %59, %61 : vector<8x128xf32>
    %63 = arith.negf %62 : vector<8x128xf32>
    %64 = math.exp %63 : vector<8x128xf32>
    %cst_29 = arith.constant 1.000000e+00 : f32
    %65 = vector.broadcast %cst_29 : f32 to vector<8x128xf32>
    %66 = arith.addf %65, %64 : vector<8x128xf32>
    %67 = arith.divf %65, %66 : vector<8x128xf32>
    %68 = math.tanh %62 : vector<8x128xf32>
    %69 = vector.extract_strided_slice %67 {offsets = [0, 0], sizes = [8, 32], strides = [1, 1]} : vector<8x128xf32> to vector<8x32xf32>
    %70 = vector.extract_strided_slice %67 {offsets = [0, 32], sizes = [8, 32], strides = [1, 1]} : vector<8x128xf32> to vector<8x32xf32>
    %71 = vector.extract_strided_slice %68 {offsets = [0, 64], sizes = [8, 32], strides = [1, 1]} : vector<8x128xf32> to vector<8x32xf32>
    %72 = vector.extract_strided_slice %67 {offsets = [0, 96], sizes = [8, 32], strides = [1, 1]} : vector<8x128xf32> to vector<8x32xf32>
    %73 = arith.mulf %70, %53 : vector<8x32xf32>
    %74 = arith.mulf %69, %71 : vector<8x32xf32>
    %75 = arith.addf %73, %74 : vector<8x32xf32>
    %76 = math.tanh %75 : vector<8x32xf32>
    %77 = arith.mulf %72, %76 : vector<8x32xf32>
    %c3_i32 = arith.constant 3 : i32
    %c8_i32_30 = arith.constant 8 : i32
    %78 = arith.muli %c3_i32, %c8_i32_30 : i32
    %79 = tpu.assume_multiple %78, 8 : i32
    %80 = arith.index_cast %79 : i32 to index
    %c0_31 = arith.constant 0 : index
    %81 = vector.load %arg10[%80, %c0_31] : memref<64x128xf32, #tpu.memory_space<vmem>>, vector<8x128xf32>
    %c0_32 = arith.constant 0 : index
    %c0_33 = arith.constant 0 : index
    %82 = vector.load %arg3[%c0_32, %c0_33] : memref<32x128xf32, #tpu.memory_space<vmem>>, vector<32x128xf32>
    %cst_34 = arith.constant dense<0.000000e+00> : vector<8x128xf32>
    %83 = tpu.matmul %77, %82, %cst_34 {dimension_numbers = #tpu.dot_dimension_numbers<[1], [0], [0], [1], [0, 0, 1, 1], [], []>} : vector<8x32xf32>, vector<32x128xf32>, vector<8x128xf32> -> vector<8x128xf32>
    %84 = arith.addf %81, %83 : vector<8x128xf32>
    %85 = arith.negf %84 : vector<8x128xf32>
    %86 = math.exp %85 : vector<8x128xf32>
    %cst_35 = arith.constant 1.000000e+00 : f32
    %87 = vector.broadcast %cst_35 : f32 to vector<8x128xf32>
    %88 = arith.addf %87, %86 : vector<8x128xf32>
    %89 = arith.divf %87, %88 : vector<8x128xf32>
    %90 = math.tanh %84 : vector<8x128xf32>
    %91 = vector.extract_strided_slice %89 {offsets = [0, 0], sizes = [8, 32], strides = [1, 1]} : vector<8x128xf32> to vector<8x32xf32>
    %92 = vector.extract_strided_slice %89 {offsets = [0, 32], sizes = [8, 32], strides = [1, 1]} : vector<8x128xf32> to vector<8x32xf32>
    %93 = vector.extract_strided_slice %90 {offsets = [0, 64], sizes = [8, 32], strides = [1, 1]} : vector<8x128xf32> to vector<8x32xf32>
    %94 = vector.extract_strided_slice %89 {offsets = [0, 96], sizes = [8, 32], strides = [1, 1]} : vector<8x128xf32> to vector<8x32xf32>
    %95 = arith.mulf %92, %75 : vector<8x32xf32>
    %96 = arith.mulf %91, %93 : vector<8x32xf32>
    %97 = arith.addf %95, %96 : vector<8x32xf32>
    %98 = math.tanh %97 : vector<8x32xf32>
    %99 = arith.mulf %94, %98 : vector<8x32xf32>
    %c4_i32 = arith.constant 4 : i32
    %c8_i32_36 = arith.constant 8 : i32
    %100 = arith.muli %c4_i32, %c8_i32_36 : i32
    %101 = tpu.assume_multiple %100, 8 : i32
    %102 = arith.index_cast %101 : i32 to index
    %c0_37 = arith.constant 0 : index
    %103 = vector.load %arg10[%102, %c0_37] : memref<64x128xf32, #tpu.memory_space<vmem>>, vector<8x128xf32>
    %c0_38 = arith.constant 0 : index
    %c0_39 = arith.constant 0 : index
    %104 = vector.load %arg3[%c0_38, %c0_39] : memref<32x128xf32, #tpu.memory_space<vmem>>, vector<32x128xf32>
    %cst_40 = arith.constant dense<0.000000e+00> : vector<8x128xf32>
    %105 = tpu.matmul %99, %104, %cst_40 {dimension_numbers = #tpu.dot_dimension_numbers<[1], [0], [0], [1], [0, 0, 1, 1], [], []>} : vector<8x32xf32>, vector<32x128xf32>, vector<8x128xf32> -> vector<8x128xf32>
    %106 = arith.addf %103, %105 : vector<8x128xf32>
    %107 = arith.negf %106 : vector<8x128xf32>
    %108 = math.exp %107 : vector<8x128xf32>
    %cst_41 = arith.constant 1.000000e+00 : f32
    %109 = vector.broadcast %cst_41 : f32 to vector<8x128xf32>
    %110 = arith.addf %109, %108 : vector<8x128xf32>
    %111 = arith.divf %109, %110 : vector<8x128xf32>
    %112 = math.tanh %106 : vector<8x128xf32>
    %113 = vector.extract_strided_slice %111 {offsets = [0, 0], sizes = [8, 32], strides = [1, 1]} : vector<8x128xf32> to vector<8x32xf32>
    %114 = vector.extract_strided_slice %111 {offsets = [0, 32], sizes = [8, 32], strides = [1, 1]} : vector<8x128xf32> to vector<8x32xf32>
    %115 = vector.extract_strided_slice %112 {offsets = [0, 64], sizes = [8, 32], strides = [1, 1]} : vector<8x128xf32> to vector<8x32xf32>
    %116 = vector.extract_strided_slice %111 {offsets = [0, 96], sizes = [8, 32], strides = [1, 1]} : vector<8x128xf32> to vector<8x32xf32>
    %117 = arith.mulf %114, %97 : vector<8x32xf32>
    %118 = arith.mulf %113, %115 : vector<8x32xf32>
    %119 = arith.addf %117, %118 : vector<8x32xf32>
    %120 = math.tanh %119 : vector<8x32xf32>
    %121 = arith.mulf %116, %120 : vector<8x32xf32>
    %c5_i32 = arith.constant 5 : i32
    %c8_i32_42 = arith.constant 8 : i32
    %122 = arith.muli %c5_i32, %c8_i32_42 : i32
    %123 = tpu.assume_multiple %122, 8 : i32
    %124 = arith.index_cast %123 : i32 to index
    %c0_43 = arith.constant 0 : index
    %125 = vector.load %arg10[%124, %c0_43] : memref<64x128xf32, #tpu.memory_space<vmem>>, vector<8x128xf32>
    %c0_44 = arith.constant 0 : index
    %c0_45 = arith.constant 0 : index
    %126 = vector.load %arg3[%c0_44, %c0_45] : memref<32x128xf32, #tpu.memory_space<vmem>>, vector<32x128xf32>
    %cst_46 = arith.constant dense<0.000000e+00> : vector<8x128xf32>
    %127 = tpu.matmul %121, %126, %cst_46 {dimension_numbers = #tpu.dot_dimension_numbers<[1], [0], [0], [1], [0, 0, 1, 1], [], []>} : vector<8x32xf32>, vector<32x128xf32>, vector<8x128xf32> -> vector<8x128xf32>
    %128 = arith.addf %125, %127 : vector<8x128xf32>
    %129 = arith.negf %128 : vector<8x128xf32>
    %130 = math.exp %129 : vector<8x128xf32>
    %cst_47 = arith.constant 1.000000e+00 : f32
    %131 = vector.broadcast %cst_47 : f32 to vector<8x128xf32>
    %132 = arith.addf %131, %130 : vector<8x128xf32>
    %133 = arith.divf %131, %132 : vector<8x128xf32>
    %134 = math.tanh %128 : vector<8x128xf32>
    %135 = vector.extract_strided_slice %133 {offsets = [0, 0], sizes = [8, 32], strides = [1, 1]} : vector<8x128xf32> to vector<8x32xf32>
    %136 = vector.extract_strided_slice %133 {offsets = [0, 32], sizes = [8, 32], strides = [1, 1]} : vector<8x128xf32> to vector<8x32xf32>
    %137 = vector.extract_strided_slice %134 {offsets = [0, 64], sizes = [8, 32], strides = [1, 1]} : vector<8x128xf32> to vector<8x32xf32>
    %138 = vector.extract_strided_slice %133 {offsets = [0, 96], sizes = [8, 32], strides = [1, 1]} : vector<8x128xf32> to vector<8x32xf32>
    %139 = arith.mulf %136, %119 : vector<8x32xf32>
    %140 = arith.mulf %135, %137 : vector<8x32xf32>
    %141 = arith.addf %139, %140 : vector<8x32xf32>
    %142 = math.tanh %141 : vector<8x32xf32>
    %143 = arith.mulf %138, %142 : vector<8x32xf32>
    %c6_i32 = arith.constant 6 : i32
    %c8_i32_48 = arith.constant 8 : i32
    %144 = arith.muli %c6_i32, %c8_i32_48 : i32
    %145 = tpu.assume_multiple %144, 8 : i32
    %146 = arith.index_cast %145 : i32 to index
    %c0_49 = arith.constant 0 : index
    %147 = vector.load %arg10[%146, %c0_49] : memref<64x128xf32, #tpu.memory_space<vmem>>, vector<8x128xf32>
    %c0_50 = arith.constant 0 : index
    %c0_51 = arith.constant 0 : index
    %148 = vector.load %arg3[%c0_50, %c0_51] : memref<32x128xf32, #tpu.memory_space<vmem>>, vector<32x128xf32>
    %cst_52 = arith.constant dense<0.000000e+00> : vector<8x128xf32>
    %149 = tpu.matmul %143, %148, %cst_52 {dimension_numbers = #tpu.dot_dimension_numbers<[1], [0], [0], [1], [0, 0, 1, 1], [], []>} : vector<8x32xf32>, vector<32x128xf32>, vector<8x128xf32> -> vector<8x128xf32>
    %150 = arith.addf %147, %149 : vector<8x128xf32>
    %151 = arith.negf %150 : vector<8x128xf32>
    %152 = math.exp %151 : vector<8x128xf32>
    %cst_53 = arith.constant 1.000000e+00 : f32
    %153 = vector.broadcast %cst_53 : f32 to vector<8x128xf32>
    %154 = arith.addf %153, %152 : vector<8x128xf32>
    %155 = arith.divf %153, %154 : vector<8x128xf32>
    %156 = math.tanh %150 : vector<8x128xf32>
    %157 = vector.extract_strided_slice %155 {offsets = [0, 0], sizes = [8, 32], strides = [1, 1]} : vector<8x128xf32> to vector<8x32xf32>
    %158 = vector.extract_strided_slice %155 {offsets = [0, 32], sizes = [8, 32], strides = [1, 1]} : vector<8x128xf32> to vector<8x32xf32>
    %159 = vector.extract_strided_slice %156 {offsets = [0, 64], sizes = [8, 32], strides = [1, 1]} : vector<8x128xf32> to vector<8x32xf32>
    %160 = vector.extract_strided_slice %155 {offsets = [0, 96], sizes = [8, 32], strides = [1, 1]} : vector<8x128xf32> to vector<8x32xf32>
    %161 = arith.mulf %158, %141 : vector<8x32xf32>
    %162 = arith.mulf %157, %159 : vector<8x32xf32>
    %163 = arith.addf %161, %162 : vector<8x32xf32>
    %164 = math.tanh %163 : vector<8x32xf32>
    %165 = arith.mulf %160, %164 : vector<8x32xf32>
    %c7_i32 = arith.constant 7 : i32
    %c8_i32_54 = arith.constant 8 : i32
    %166 = arith.muli %c7_i32, %c8_i32_54 : i32
    %167 = tpu.assume_multiple %166, 8 : i32
    %168 = arith.index_cast %167 : i32 to index
    %c0_55 = arith.constant 0 : index
    %169 = vector.load %arg10[%168, %c0_55] : memref<64x128xf32, #tpu.memory_space<vmem>>, vector<8x128xf32>
    %c0_56 = arith.constant 0 : index
    %c0_57 = arith.constant 0 : index
    %170 = vector.load %arg3[%c0_56, %c0_57] : memref<32x128xf32, #tpu.memory_space<vmem>>, vector<32x128xf32>
    %cst_58 = arith.constant dense<0.000000e+00> : vector<8x128xf32>
    %171 = tpu.matmul %165, %170, %cst_58 {dimension_numbers = #tpu.dot_dimension_numbers<[1], [0], [0], [1], [0, 0, 1, 1], [], []>} : vector<8x32xf32>, vector<32x128xf32>, vector<8x128xf32> -> vector<8x128xf32>
    %172 = arith.addf %169, %171 : vector<8x128xf32>
    %173 = arith.negf %172 : vector<8x128xf32>
    %174 = math.exp %173 : vector<8x128xf32>
    %cst_59 = arith.constant 1.000000e+00 : f32
    %175 = vector.broadcast %cst_59 : f32 to vector<8x128xf32>
    %176 = arith.addf %175, %174 : vector<8x128xf32>
    %177 = arith.divf %175, %176 : vector<8x128xf32>
    %178 = math.tanh %172 : vector<8x128xf32>
    %179 = vector.extract_strided_slice %177 {offsets = [0, 0], sizes = [8, 32], strides = [1, 1]} : vector<8x128xf32> to vector<8x32xf32>
    %180 = vector.extract_strided_slice %177 {offsets = [0, 32], sizes = [8, 32], strides = [1, 1]} : vector<8x128xf32> to vector<8x32xf32>
    %181 = vector.extract_strided_slice %178 {offsets = [0, 64], sizes = [8, 32], strides = [1, 1]} : vector<8x128xf32> to vector<8x32xf32>
    %182 = vector.extract_strided_slice %177 {offsets = [0, 96], sizes = [8, 32], strides = [1, 1]} : vector<8x128xf32> to vector<8x32xf32>
    %183 = arith.mulf %180, %163 : vector<8x32xf32>
    %184 = arith.mulf %179, %181 : vector<8x32xf32>
    %185 = arith.addf %183, %184 : vector<8x32xf32>
    %186 = math.tanh %185 : vector<8x32xf32>
    %187 = arith.mulf %182, %186 : vector<8x32xf32>
    %c8_i32_60 = arith.constant 8 : i32
    %c0_61 = arith.constant 0 : index
    %c0_62 = arith.constant 0 : index
    %188 = vector.load %arg8[%c0_61, %c0_62] : memref<8x32xf32, #tpu.memory_space<vmem>>, vector<8x32xf32>
    tpu.vector_store %arg8[%c0_61, %c0_62], %187 {strides = array<i32>} : memref<8x32xf32, #tpu.memory_space<vmem>>, vector<8x32xf32>,
    %c0_63 = arith.constant 0 : index
    %c0_64 = arith.constant 0 : index
    %189 = vector.load %arg9[%c0_63, %c0_64] : memref<8x32xf32, #tpu.memory_space<vmem>>, vector<8x32xf32>
    tpu.vector_store %arg9[%c0_63, %c0_64], %185 {strides = array<i32>} : memref<8x32xf32, #tpu.memory_space<vmem>>, vector<8x32xf32>,
    %c0_i32_65 = arith.constant 0 : i32
    %190 = arith.cmpi eq, %arg0, %c0_i32_65 : i32
    %191 = arith.extui %190 : i1 to i32
    %c0_i32_66 = arith.constant 0 : i32
    %192 = arith.cmpi ne, %191, %c0_i32_66 : i32
    scf.if %192 {
      %c0_67 = arith.constant 0 : index
      %c0_68 = arith.constant 0 : index
      %193 = vector.load %arg5[%c0_67, %c0_68] : memref<32x128xf32, #tpu.memory_space<vmem>>, vector<32x128xf32>
      %cst_69 = arith.constant dense<0.000000e+00> : vector<8x128xf32>
      %194 = tpu.matmul %187, %193, %cst_69 {dimension_numbers = #tpu.dot_dimension_numbers<[1], [0], [0], [1], [0, 0, 1, 1], [], []>} : vector<8x32xf32>, vector<32x128xf32>, vector<8x128xf32> -> vector<8x128xf32>
      %c0_70 = arith.constant 0 : index
      %c0_71 = arith.constant 0 : index
      %195 = vector.load %arg6[%c0_70, %c0_71] : memref<1x128xf32, #tpu.memory_space<vmem>>, vector<1x128xf32>
      %196 = vector.broadcast %195 : vector<1x128xf32> to vector<8x128xf32>
      %197 = arith.addf %194, %196 : vector<8x128xf32>
      %c0_72 = arith.constant 0 : index
      %c0_73 = arith.constant 0 : index
      %198 = vector.load %arg7[%c0_72, %c0_73] : memref<8x128xf32, #tpu.memory_space<vmem>>, vector<8x128xf32>
      tpu.vector_store %arg7[%c0_72, %c0_73], %197 {strides = array<i32>} : memref<8x128xf32, #tpu.memory_space<vmem>>, vector<8x128xf32>,
    } else {
    }
    return
  }
  func.func @transform_0(%arg0: i32) -> (i32, i32) {
    %c0_i32 = arith.constant 0 : i32
    %c0_i32_0 = arith.constant 0 : i32
    return %arg0, %c0_i32 : i32, i32
  }
  func.func @transform_1(%arg0: i32) -> (i32, i32) {
    %c0_i32 = arith.constant 0 : i32
    %c0_i32_0 = arith.constant 0 : i32
    %c0_i32_1 = arith.constant 0 : i32
    return %c0_i32, %c0_i32_0 : i32, i32
  }
  func.func @transform_2(%arg0: i32) -> (i32, i32) {
    %c0_i32 = arith.constant 0 : i32
    %c0_i32_0 = arith.constant 0 : i32
    %c0_i32_1 = arith.constant 0 : i32
    return %c0_i32, %c0_i32_0 : i32, i32
  }
  func.func @transform_3(%arg0: i32) -> (i32, i32) {
    %c0_i32 = arith.constant 0 : i32
    %c0_i32_0 = arith.constant 0 : i32
    %c0_i32_1 = arith.constant 0 : i32
    return %c0_i32, %c0_i32_0 : i32, i32
  }
  func.func @transform_4(%arg0: i32) -> (i32, i32) {
    %c0_i32 = arith.constant 0 : i32
    %c0_i32_0 = arith.constant 0 : i32
    %c0_i32_1 = arith.constant 0 : i32
    return %c0_i32, %c0_i32_0 : i32, i32
  }
  func.func @transform_5(%arg0: i32) -> (i32, i32) {
    %c0_i32 = arith.constant 0 : i32
    %c0_i32_0 = arith.constant 0 : i32
    %c0_i32_1 = arith.constant 0 : i32
    return %c0_i32, %c0_i32_0 : i32, i32
  }
  func.func @transform_6(%arg0: i32) -> (i32, i32) {
    %c0_i32 = arith.constant 0 : i32
    %c0_i32_0 = arith.constant 0 : i32
    %c0_i32_1 = arith.constant 0 : i32
    return %c0_i32, %c0_i32_0 : i32, i32
  }
}

</mosaic_0001>

<llo_original>
// kernel: tpu_custom_call.1
$region0: #{tpu_custom_call.1}
  #allocation0 [shape = 'u32[]', space=smem, size = 0x4, offset = 0x4, fixed_abs, tag = 'smem constant byte address 0x4 - core index']
  #allocation1 [shape = 'u32[144,128]{1,0:T(1,128)}', space=vmem, size = 0x12000, scoped, tag = 'internal scratch']
  #allocation2 [shape = 'f32[8,32]{1,0:T(8,128)}', space=vmem, size = 0x1000, scoped, tag = 'scratch operand']
  #allocation3 [shape = 'f32[8,32]{1,0:T(8,128)}', space=vmem, size = 0x1000, scoped, tag = 'scratch operand']
  #allocation4 [shape = 'f32[64,128]{1,0:T(8,128)}', space=vmem, size = 0x8000, scoped, tag = 'scratch operand']
  %s0 = inlined_call_operand.vmem [shape: f32[64,16], index: 0, kind: input, shape index: {}]
  %s1 = inlined_call_operand.vmem [shape: f32[16,128], index: 1, kind: input, shape index: {}]
  %s2 = inlined_call_operand.vmem [shape: f32[32,128], index: 2, kind: input, shape index: {}]
  %s3 = inlined_call_operand.vmem [shape: f32[1,128], index: 3, kind: input, shape index: {}]
  %s4 = inlined_call_operand.vmem [shape: f32[32,128], index: 4, kind: input, shape index: {}]
  %s5 = inlined_call_operand.vmem [shape: f32[1,128], index: 5, kind: input, shape index: {}]
  %s6 = inlined_call_operand.hbm [shape: f32[8,128], index: 6, kind: output, shape index: {}]
  %s7 = sld [smem:[#allocation0]]
  $region42: #{tpu_custom_call.1} parent=0
    _
  %s9 = ssub.s32 1, %s7
  %s10 = scalar_select 0, %s9, %s7
  $region1: #{tpu_custom_call.1} parent=0
    #allocation5 [shape = 'u8[4096]{0}', space=vmem, size = 0x1000, scoped, tag = 'output window, operand 0, single buffered']
    #allocation6 [shape = 's32[1]{0}', space=sflag, size = 0x4, scoped, tag = 'scoped memory for tpu_custom_call.1']
    %11 = vsyncpa [#allocation6], 0
    // Predicated region
    $region2: #{tpu_custom_call.1} parent=1 // pred_check
      _
    $region3: #{tpu_custom_call.1} parent=1 // pred_check_branch
      %13 = sbr.rel (0) target = $region5
    $region4: #{tpu_custom_call.1} parent=1 // pred_region
      _
    $region5: #{tpu_custom_call.1} parent=1 // pred_fallthru
      _
    // Predicated region
    $region6: #{tpu_custom_call.1} parent=1 // pred_check
      _
    $region7: #{tpu_custom_call.1} parent=1 // pred_check_branch
      %15 = sbr.rel (0) target = $region9
    $region8: #{tpu_custom_call.1} parent=1 // pred_region
      _
    $region9: #{tpu_custom_call.1} parent=1 // pred_fallthru
      _
    // Predicated region
    $region10: #{tpu_custom_call.1} parent=1 // pred_check
      _
    $region11: #{tpu_custom_call.1} parent=1 // pred_check_branch
      %17 = sbr.rel (0) target = $region13
    $region12: #{tpu_custom_call.1} parent=1 // pred_region
      _
    $region13: #{tpu_custom_call.1} parent=1 // pred_fallthru
      _
    // Predicated region
    $region14: #{tpu_custom_call.1} parent=1 // pred_check
      _
    $region15: #{tpu_custom_call.1} parent=1 // pred_check_branch
      %19 = sbr.rel (0) target = $region17
    $region16: #{tpu_custom_call.1} parent=1 // pred_region
      _
    $region17: #{tpu_custom_call.1} parent=1 // pred_fallthru
      _
    // Predicated region
    $region18: #{tpu_custom_call.1} parent=1 // pred_check
      _
    $region19: #{tpu_custom_call.1} parent=1 // pred_check_branch
      %21 = sbr.rel (0) target = $region21
    $region20: #{tpu_custom_call.1} parent=1 // pred_region
      _
    $region21: #{tpu_custom_call.1} parent=1 // pred_fallthru
      _
    // Predicated region
    $region22: #{tpu_custom_call.1} parent=1 // pred_check
      _
    $region23: #{tpu_custom_call.1} parent=1 // pred_check_branch
      %23 = sbr.rel (0) target = $region25
    $region24: #{tpu_custom_call.1} parent=1 // pred_region
      _
    $region25: #{tpu_custom_call.1} parent=1 // pred_fallthru
      _
    %p24 = scmp.eq.s32.totalorder 0, 0
    // Predicated region
    $region26: #{tpu_custom_call.1} parent=1 // pred_check
      %p25 = pneg %p24
    $region27: #{tpu_custom_call.1} parent=1 // pred_check_branch
      %27 = sbr.rel (%p25) target = $region29
    $region28: #{tpu_custom_call.1} parent=1 // pred_region
      %vm28 = vcmask 261120
      %29 = vst.msk [vmem:[#allocation2] sm:$0xff] %vm28, 0.0
      %30 = vst.msk [vmem:[#allocation3] sm:$0xff] %vm28, 0.0
    $region29: #{tpu_custom_call.1} parent=1 // pred_fallthru
      _
    %v31 = vld [vmem:[%s0] sm:$0xff]
    %v32 = vld [vmem:[%s0 + $0x8] sm:$0xff]
    %v33 = vld [vmem:[%s0 + $0x10] sm:$0xff]
    %v34 = vld [vmem:[%s0 + $0x18] sm:$0xff]
    %v35 = vld [vmem:[%s0 + $0x20] sm:$0xff]
    %v36 = vld [vmem:[%s0 + $0x28] sm:$0xff]
    %v37 = vld [vmem:[%s0 + $0x30] sm:$0xff]
    %v38 = vld [vmem:[%s0 + $0x38] sm:$0xff]
    %v39 = vld [vmem:[%s1] sm:$0xff]
    %v40 = vld [vmem:[%s1 + $0x8] sm:$0xff]
    %v41 = vld [vmem:[%s3] sm:$0x1]
    %v43 = vlaneseq
    %v44 = vshrl.u32 %v43, 7
    %v45 = vsub.s32 0, %v44
    %v46 = vrot.slane %v41, %v45
    %vm48 = vcmask 130048
    %v50 = vsel %vm48, %v31, 0
    %v53 = vsel %vm48, %v32, 0
    %v56 = vsel %vm48, %v33, 0
    %v59 = vsel %vm48, %v34, 0
    %v62 = vsel %vm48, %v35, 0
    %v65 = vsel %vm48, %v36, 0
    %v68 = vsel %vm48, %v37, 0
    %v71 = vsel %vm48, %v38, 0
    %73 = vmatprep.subr.mxu0 0.0
    %74 = vmatpush1.msra.mxu0 %v39
    %75 = vmatprep.subr.mxu0 0.0
    %76 = vmatpush1.msra.mxu0 %v40
    %77 = vmatprep.subr.mxu0 0.0
    %78 = vmatpush1.msra.mxu0 0.0
    %79 = vmatprep.subr.mxu0 0.0
    %80 = vmatpush1.msra.mxu0 0.0
    %81 = vmatprep.subr.mxu0 0.0
    %82 = vmatpush1.msra.mxu0 0.0
    %83 = vmatprep.subr.mxu0 0.0
    %84 = vmatpush1.msra.mxu0 0.0
    %85 = vmatprep.subr.mxu0 0.0
    %86 = vmatpush1.msra.mxu0 0.0
    %87 = vmatprep.subr.mxu0 0.0
    %88 = vmatpush1.msra.mxu0 0.0
    %89 = vmatprep.subr.mxu0 0.0
    %90 = vmatpush1.msra.mxu0 0.0
    %91 = vmatprep.subr.mxu0 0.0
    %92 = vmatpush1.msra.mxu0 0.0
    %93 = vmatprep.subr.mxu0 0.0
    %94 = vmatpush1.msra.mxu0 0.0
    %95 = vmatprep.subr.mxu0 0.0
    %96 = vmatpush1.msra.mxu0 0.0
    %97 = vmatprep.subr.mxu0 0.0
    %98 = vmatpush1.msra.mxu0 0.0
    %99 = vmatprep.subr.mxu0 0.0
    %100 = vmatpush1.msra.mxu0 0.0
    %101 = vmatprep.subr.mxu0 0.0
    %102 = vmatpush1.msra.mxu0 0.0
    %103 = vmatprep.subr.mxu0 0.0
    %104 = vmatpush1.msra.mxu0 0.0
    %105 = vmatprep.subr.mxu0 0.0
    %106 = vmatpush1.msra.mxu0 0.0
    %107 = vmatprep.subr.mxu0 0.0
    %108 = vmatpush1.msra.mxu0 0.0
    %109 = vmatprep.subr.mxu0 0.0
    %110 = vmatpush1.msra.mxu0 0.0
    %111 = vmatprep.subr.mxu0 0.0
    %112 = vmatpush1.msra.mxu0 0.0
    %113 = vmatprep.subr.mxu0 0.0
    %114 = vmatpush1.msra.mxu0 0.0
    %115 = vmatprep.subr.mxu0 0.0
    %116 = vmatpush1.msra.mxu0 0.0
    %117 = vmatprep.subr.mxu0 0.0
    %118 = vmatpush1.msra.mxu0 0.0
    %119 = vmatprep.subr.mxu0 0.0
    %120 = vmatpush1.msra.mxu0 0.0
    %121 = vmatprep.subr.mxu0 0.0
    %122 = vmatpush1.msra.mxu0 0.0
    %123 = vmatprep.subr.mxu0 0.0
    %124 = vmatpush1.msra.mxu0 0.0
    %125 = vmatprep.subr.mxu0 0.0
    %126 = vmatpush1.msra.mxu0 0.0
    %127 = vmatprep.subr.mxu0 0.0
    %128 = vmatpush1.msra.mxu0 0.0
    %129 = vmatprep.subr.mxu0 0.0
    %130 = vmatpush1.msra.mxu0 0.0
    %131 = vmatprep.subr.mxu0 0.0
    %132 = vmatpush1.msra.mxu0 0.0
    %133 = vmatprep.subr.mxu0 0.0
    %134 = vmatpush1.msra.mxu0 0.0
    %135 = vmatprep.subr.mxu0 0.0
    %136 = vmatpush1.msra.mxu0 0.0
    %137 = vmatprep.mubr.f32.mxu0 0.0
    %138 = vmatmul.mubr.f32.gmra.mrb[0].mxu0 %v50
    %v139 = vpop.f32.mrb[0].mxu0
    %v140 = vadd.f32 %v46, %v139
    %v141 = vpop.f32.mrb[0].mxu0
    %142 = vmatprep.mubr.f32.mxu0 0.0
    %143 = vmatmul.mubr.f32.gmra.mrb[0].mxu0 %v53
    %v144 = vpop.f32.mrb[0].mxu0
    %v145 = vadd.f32 %v46, %v144
    %v146 = vpop.f32.mrb[0].mxu0
    %147 = vmatprep.mubr.f32.mxu0 0.0
    %148 = vmatmul.mubr.f32.gmra.mrb[0].mxu0 %v56
    %v149 = vpop.f32.mrb[0].mxu0
    %v150 = vadd.f32 %v46, %v149
    %v151 = vpop.f32.mrb[0].mxu0
    %152 = vmatprep.mubr.f32.mxu0 0.0
    %153 = vmatmul.mubr.f32.gmra.mrb[0].mxu0 %v59
    %v154 = vpop.f32.mrb[0].mxu0
    %v155 = vadd.f32 %v46, %v154
    %v156 = vpop.f32.mrb[0].mxu0
    %157 = vmatprep.mubr.f32.mxu0 0.0
    %158 = vmatmul.mubr.f32.gmra.mrb[0].mxu0 %v62
    %v159 = vpop.f32.mrb[0].mxu0
    %v160 = vadd.f32 %v46, %v159
    %v161 = vpop.f32.mrb[0].mxu0
    %162 = vmatprep.mubr.f32.mxu0 0.0
    %163 = vmatmul.mubr.f32.gmra.mrb[0].mxu0 %v65
    %v164 = vpop.f32.mrb[0].mxu0
    %v165 = vadd.f32 %v46, %v164
    %v166 = vpop.f32.mrb[0].mxu0
    %167 = vmatprep.mubr.f32.mxu0 0.0
    %168 = vmatmul.mubr.f32.gmra.mrb[0].mxu0 %v68
    %v169 = vpop.f32.mrb[0].mxu0
    %v170 = vadd.f32 %v46, %v169
    %v171 = vpop.f32.mrb[0].mxu0
    %172 = vmatprep.mubr.f32.mxu0 0.0
    %173 = vmatmul.mubr.f32.gmra.mrb[0].mxu0 %v71
    %v174 = vpop.f32.mrb[0].mxu0
    %v175 = vadd.f32 %v46, %v174
    %v176 = vpop.f32.mrb[0].mxu0
    %177 = vdwg.mxu0
    %178 = vst [vmem:[#allocation4] sm:$0xff] %v140
    %179 = vst [vmem:[#allocation4 + $0x8] sm:$0xff] %v145
    %180 = vst [vmem:[#allocation4 + $0x10] sm:$0xff] %v150
    %181 = vst [vmem:[#allocation4 + $0x18] sm:$0xff] %v155
    %182 = vst [vmem:[#allocation4 + $0x20] sm:$0xff] %v160
    %183 = vst [vmem:[#allocation4 + $0x28] sm:$0xff] %v165
    %184 = vst [vmem:[#allocation4 + $0x30] sm:$0xff] %v170
    %185 = vst [vmem:[#allocation4 + $0x38] sm:$0xff] %v175
    %v186 = vld [vmem:[#allocation2] sm:$0xff]
    %v187 = vld [vmem:[#allocation3] sm:$0xff]
    %v188 = vld [vmem:[#allocation4] sm:$0xff]
    %v189 = vld [vmem:[%s2] sm:$0xff]
    %v190 = vld [vmem:[%s2 + $0x8] sm:$0xff]
    %v191 = vld [vmem:[%s2 + $0x10] sm:$0xff]
    %v192 = vld [vmem:[%s2 + $0x18] sm:$0xff]
    %vm193 = vcmask 261120
    %v195 = vsel %vm193, %v186, 0
    %197 = vmatprep.subr.mxu0 0.0
    %198 = vmatpush1.msra.mxu0 %v189
    %199 = vmatprep.subr.mxu0 0.0
    %200 = vmatpush1.msra.mxu0 %v190
    %201 = vmatprep.subr.mxu0 0.0
    %202 = vmatpush1.msra.mxu0 %v191
    %203 = vmatprep.subr.mxu0 0.0
    %204 = vmatpush1.msra.mxu0 %v192
    %205 = vmatprep.subr.mxu0 0.0
    %206 = vmatpush1.msra.mxu0 0.0
    %207 = vmatprep.subr.mxu0 0.0
    %208 = vmatpush1.msra.mxu0 0.0
    %209 = vmatprep.subr.mxu0 0.0
    %210 = vmatpush1.msra.mxu0 0.0
    %211 = vmatprep.subr.mxu0 0.0
    %212 = vmatpush1.msra.mxu0 0.0
    %213 = vmatprep.subr.mxu0 0.0
    %214 = vmatpush1.msra.mxu0 0.0
    %215 = vmatprep.subr.mxu0 0.0
    %216 = vmatpush1.msra.mxu0 0.0
    %217 = vmatprep.subr.mxu0 0.0
    %218 = vmatpush1.msra.mxu0 0.0
    %219 = vmatprep.subr.mxu0 0.0
    %220 = vmatpush1.msra.mxu0 0.0
    %221 = vmatprep.subr.mxu0 0.0
    %222 = vmatpush1.msra.mxu0 0.0
    %223 = vmatprep.subr.mxu0 0.0
    %224 = vmatpush1.msra.mxu0 0.0
    %225 = vmatprep.subr.mxu0 0.0
    %226 = vmatpush1.msra.mxu0 0.0
    %227 = vmatprep.subr.mxu0 0.0
    %228 = vmatpush1.msra.mxu0 0.0
    %229 = vmatprep.subr.mxu0 0.0
    %230 = vmatpush1.msra.mxu0 0.0
    %231 = vmatprep.subr.mxu0 0.0
    %232 = vmatpush1.msra.mxu0 0.0
    %233 = vmatprep.subr.mxu0 0.0
    %234 = vmatpush1.msra.mxu0 0.0
    %235 = vmatprep.subr.mxu0 0.0
    %236 = vmatpush1.msra.mxu0 0.0
    %237 = vmatprep.subr.mxu0 0.0
    %238 = vmatpush1.msra.mxu0 0.0
    %239 = vmatprep.subr.mxu0 0.0
    %240 = vmatpush1.msra.mxu0 0.0
    %241 = vmatprep.subr.mxu0 0.0
    %242 = vmatpush1.msra.mxu0 0.0
    %243 = vmatprep.subr.mxu0 0.0
    %244 = vmatpush1.msra.mxu0 0.0
    %245 = vmatprep.subr.mxu0 0.0
    %246 = vmatpush1.msra.mxu0 0.0
    %247 = vmatprep.subr.mxu0 0.0
    %248 = vmatpush1.msra.mxu0 0.0
    %249 = vmatprep.subr.mxu0 0.0
    %250 = vmatpush1.msra.mxu0 0.0
    %251 = vmatprep.subr.mxu0 0.0
    %252 = vmatpush1.msra.mxu0 0.0
    %253 = vmatprep.subr.mxu0 0.0
    %254 = vmatpush1.msra.mxu0 0.0
    %255 = vmatprep.subr.mxu0 0.0
    %256 = vmatpush1.msra.mxu0 0.0
    %257 = vmatprep.subr.mxu0 0.0
    %258 = vmatpush1.msra.mxu0 0.0
    %259 = vmatprep.subr.mxu0 0.0
    %260 = vmatpush1.msra.mxu0 0.0
    %261 = vmatprep.mubr.f32.mxu0 0.0
    %262 = vmatmul.mubr.f32.gmra.mrb[0].mxu0 %v195
    %v263 = vpop.f32.mrb[0].mxu0
    %v264 = vadd.f32 0.0, %v263
    %v265 = vpop.f32.mrb[0].mxu0
    %266 = vdwg.mxu0
    %v267 = vadd.f32 %v188, %v264
    %v268 = vxor.u32 %v267, 2147483648
    %v269 = vmul.f32 %v268, 1.442695
    %v270 = vpow.pop %v269
    %v271 = vadd.f32 %v270, 1.0
    %v272 = vrcp.pop %v271
    %v273 = vmul.f32 1.0, %v272
    %v274 = vtanh.pop %v267
    %276 = vrot.lane.b32.xlu0 %v187, 32
    %v277 = vpop.permute.xlu0 %276
    %v279 = vmul.f32 %v273, %v277
    %281 = vrot.lane.b32.xlu0 %v274, 64
    %v282 = vpop.permute.xlu0 %281
    %v284 = vmul.f32 %v273, %v282
    %286 = vrot.lane.b32.xlu0 %v284, 32
    %v287 = vpop.permute.xlu0 %286
    %v289 = vadd.f32 %v279, %v287
    %v290 = vtanh.pop %v289
    %292 = vrot.lane.b32.xlu0 %v290, 64
    %v293 = vpop.permute.xlu0 %292
    %v295 = vmul.f32 %v273, %v293
    %s296 = scalar_lea.vmem [#allocation4], 8
    %v297 = vld [vmem:[%s296] sm:$0xff]
    %299 = vrot.lane.b32.xlu0 %v295, 32
    %v300 = vpop.permute.xlu0 %299
    %v301 = vsel %vm193, %v300, 0
    %303 = vmatprep.subr.mxu0 0.0
    %304 = vmatpush1.msra.mxu0 %v189
    %305 = vmatprep.subr.mxu0 0.0
    %306 = vmatpush1.msra.mxu0 %v190
    %307 = vmatprep.subr.mxu0 0.0
    %308 = vmatpush1.msra.mxu0 %v191
    %309 = vmatprep.subr.mxu0 0.0
    %310 = vmatpush1.msra.mxu0 %v192
    %311 = vmatprep.subr.mxu0 0.0
    %312 = vmatpush1.msra.mxu0 0.0
    %313 = vmatprep.subr.mxu0 0.0
    %314 = vmatpush1.msra.mxu0 0.0
    %315 = vmatprep.subr.mxu0 0.0
    %316 = vmatpush1.msra.mxu0 0.0
    %317 = vmatprep.subr.mxu0 0.0
    %318 = vmatpush1.msra.mxu0 0.0
    %319 = vmatprep.subr.mxu0 0.0
    %320 = vmatpush1.msra.mxu0 0.0
    %321 = vmatprep.subr.mxu0 0.0
    %322 = vmatpush1.msra.mxu0 0.0
    %323 = vmatprep.subr.mxu0 0.0
    %324 = vmatpush1.msra.mxu0 0.0
    %325 = vmatprep.subr.mxu0 0.0
    %326 = vmatpush1.msra.mxu0 0.0
    %327 = vmatprep.subr.mxu0 0.0
    %328 = vmatpush1.msra.mxu0 0.0
    %329 = vmatprep.subr.mxu0 0.0
    %330 = vmatpush1.msra.mxu0 0.0
    %331 = vmatprep.subr.mxu0 0.0
    %332 = vmatpush1.msra.mxu0 0.0
    %333 = vmatprep.subr.mxu0 0.0
    %334 = vmatpush1.msra.mxu0 0.0
    %335 = vmatprep.subr.mxu0 0.0
    %336 = vmatpush1.msra.mxu0 0.0
    %337 = vmatprep.subr.mxu0 0.0
    %338 = vmatpush1.msra.mxu0 0.0
    %339 = vmatprep.subr.mxu0 0.0
    %340 = vmatpush1.msra.mxu0 0.0
    %341 = vmatprep.subr.mxu0 0.0
    %342 = vmatpush1.msra.mxu0 0.0
    %343 = vmatprep.subr.mxu0 0.0
    %344 = vmatpush1.msra.mxu0 0.0
    %345 = vmatprep.subr.mxu0 0.0
    %346 = vmatpush1.msra.mxu0 0.0
    %347 = vmatprep.subr.mxu0 0.0
    %348 = vmatpush1.msra.mxu0 0.0
    %349 = vmatprep.subr.mxu0 0.0
    %350 = vmatpush1.msra.mxu0 0.0
    %351 = vmatprep.subr.mxu0 0.0
    %352 = vmatpush1.msra.mxu0 0.0
    %353 = vmatprep.subr.mxu0 0.0
    %354 = vmatpush1.msra.mxu0 0.0
    %355 = vmatprep.subr.mxu0 0.0
    %356 = vmatpush1.msra.mxu0 0.0
    %357 = vmatprep.subr.mxu0 0.0
    %358 = vmatpush1.msra.mxu0 0.0
    %359 = vmatprep.subr.mxu0 0.0
    %360 = vmatpush1.msra.mxu0 0.0
    %361 = vmatprep.subr.mxu0 0.0
    %362 = vmatpush1.msra.mxu0 0.0
    %363 = vmatprep.subr.mxu0 0.0
    %364 = vmatpush1.msra.mxu0 0.0
    %365 = vmatprep.subr.mxu0 0.0
    %366 = vmatpush1.msra.mxu0 0.0
    %367 = vmatprep.mubr.f32.mxu0 0.0
    %368 = vmatmul.mubr.f32.gmra.mrb[0].mxu0 %v301
    %v369 = vpop.f32.mrb[0].mxu0
    %v370 = vadd.f32 0.0, %v369
    %v371 = vpop.f32.mrb[0].mxu0
    %372 = vdwg.mxu0
    %v373 = vadd.f32 %v297, %v370
    %v374 = vxor.u32 %v373, 2147483648
    %v375 = vmul.f32 %v374, 1.442695
    %v376 = vpow.pop %v375
    %v377 = vadd.f32 %v376, 1.0
    %v378 = vrcp.pop %v377
    %v379 = vmul.f32 1.0, %v378
    %v380 = vtanh.pop %v373
    %v381 = vmul.f32 %v379, %v289
    %383 = vrot.lane.b32.xlu0 %v380, 64
    %v384 = vpop.permute.xlu0 %383
    %v386 = vmul.f32 %v379, %v384
    %388 = vrot.lane.b32.xlu0 %v386, 32
    %v389 = vpop.permute.xlu0 %388
    %v391 = vadd.f32 %v381, %v389
    %v392 = vtanh.pop %v391
    %394 = vrot.lane.b32.xlu0 %v392, 64
    %v395 = vpop.permute.xlu0 %394
    %v397 = vmul.f32 %v379, %v395
    %s398 = scalar_lea.vmem [#allocation4], 16
    %v399 = vld [vmem:[%s398] sm:$0xff]
    %401 = vrot.lane.b32.xlu0 %v397, 32
    %v402 = vpop.permute.xlu0 %401
    %v403 = vsel %vm193, %v402, 0
    %405 = vmatprep.subr.mxu0 0.0
    %406 = vmatpush1.msra.mxu0 %v189
    %407 = vmatprep.subr.mxu0 0.0
    %408 = vmatpush1.msra.mxu0 %v190
    %409 = vmatprep.subr.mxu0 0.0
    %410 = vmatpush1.msra.mxu0 %v191
    %411 = vmatprep.subr.mxu0 0.0
    %412 = vmatpush1.msra.mxu0 %v192
    %413 = vmatprep.subr.mxu0 0.0
    %414 = vmatpush1.msra.mxu0 0.0
    %415 = vmatprep.subr.mxu0 0.0
    %416 = vmatpush1.msra.mxu0 0.0
    %417 = vmatprep.subr.mxu0 0.0
    %418 = vmatpush1.msra.mxu0 0.0
    %419 = vmatprep.subr.mxu0 0.0
    %420 = vmatpush1.msra.mxu0 0.0
    %421 = vmatprep.subr.mxu0 0.0
    %422 = vmatpush1.msra.mxu0 0.0
    %423 = vmatprep.subr.mxu0 0.0
    %424 = vmatpush1.msra.mxu0 0.0
    %425 = vmatprep.subr.mxu0 0.0
    %426 = vmatpush1.msra.mxu0 0.0
    %427 = vmatprep.subr.mxu0 0.0
    %428 = vmatpush1.msra.mxu0 0.0
    %429 = vmatprep.subr.mxu0 0.0
    %430 = vmatpush1.msra.mxu0 0.0
    %431 = vmatprep.subr.mxu0 0.0
    %432 = vmatpush1.msra.mxu0 0.0
    %433 = vmatprep.subr.mxu0 0.0
    %434 = vmatpush1.msra.mxu0 0.0
    %435 = vmatprep.subr.mxu0 0.0
    %436 = vmatpush1.msra.mxu0 0.0
    %437 = vmatprep.subr.mxu0 0.0
    %438 = vmatpush1.msra.mxu0 0.0
    %439 = vmatprep.subr.mxu0 0.0
    %440 = vmatpush1.msra.mxu0 0.0
    %441 = vmatprep.subr.mxu0 0.0
    %442 = vmatpush1.msra.mxu0 0.0
    %443 = vmatprep.subr.mxu0 0.0
    %444 = vmatpush1.msra.mxu0 0.0
    %445 = vmatprep.subr.mxu0 0.0
    %446 = vmatpush1.msra.mxu0 0.0
    %447 = vmatprep.subr.mxu0 0.0
    %448 = vmatpush1.msra.mxu0 0.0
    %449 = vmatprep.subr.mxu0 0.0
    %450 = vmatpush1.msra.mxu0 0.0
    %451 = vmatprep.subr.mxu0 0.0
    %452 = vmatpush1.msra.mxu0 0.0
    %453 = vmatprep.subr.mxu0 0.0
    %454 = vmatpush1.msra.mxu0 0.0
    %455 = vmatprep.subr.mxu0 0.0
    %456 = vmatpush1.msra.mxu0 0.0
    %457 = vmatprep.subr.mxu0 0.0
    %458 = vmatpush1.msra.mxu0 0.0
    %459 = vmatprep.subr.mxu0 0.0
    %460 = vmatpush1.msra.mxu0 0.0
    %461 = vmatprep.subr.mxu0 0.0
    %462 = vmatpush1.msra.mxu0 0.0
    %463 = vmatprep.subr.mxu0 0.0
    %464 = vmatpush1.msra.mxu0 0.0
    %465 = vmatprep.subr.mxu0 0.0
    %466 = vmatpush1.msra.mxu0 0.0
    %467 = vmatprep.subr.mxu0 0.0
    %468 = vmatpush1.msra.mxu0 0.0
    %469 = vmatprep.mubr.f32.mxu0 0.0
    %470 = vmatmul.mubr.f32.gmra.mrb[0].mxu0 %v403
    %v471 = vpop.f32.mrb[0].mxu0
    %v472 = vadd.f32 0.0, %v471
    %v473 = vpop.f32.mrb[0].mxu0
    %474 = vdwg.mxu0
    %v475 = vadd.f32 %v399, %v472
    %v476 = vxor.u32 %v475, 2147483648
    %v477 = vmul.f32 %v476, 1.442695
    %v478 = vpow.pop %v477
    %v479 = vadd.f32 %v478, 1.0
    %v480 = vrcp.pop %v479
    %v481 = vmul.f32 1.0, %v480
    %v482 = vtanh.pop %v475
    %v483 = vmul.f32 %v481, %v391
    %485 = vrot.lane.b32.xlu0 %v482, 64
    %v486 = vpop.permute.xlu0 %485
    %v488 = vmul.f32 %v481, %v486
    %490 = vrot.lane.b32.xlu0 %v488, 32
    %v491 = vpop.permute.xlu0 %490
    %v493 = vadd.f32 %v483, %v491
    %v494 = vtanh.pop %v493
    %496 = vrot.lane.b32.xlu0 %v494, 64
    %v497 = vpop.permute.xlu0 %496
    %v499 = vmul.f32 %v481, %v497
    %s500 = scalar_lea.vmem [#allocation4], 24
    %v501 = vld [vmem:[%s500] sm:$0xff]
    %503 = vrot.lane.b32.xlu0 %v499, 32
    %v504 = vpop.permute.xlu0 %503
    %v505 = vsel %vm193, %v504, 0
    %507 = vmatprep.subr.mxu0 0.0
    %508 = vmatpush1.msra.mxu0 %v189
    %509 = vmatprep.subr.mxu0 0.0
    %510 = vmatpush1.msra.mxu0 %v190
    %511 = vmatprep.subr.mxu0 0.0
    %512 = vmatpush1.msra.mxu0 %v191
    %513 = vmatprep.subr.mxu0 0.0
    %514 = vmatpush1.msra.mxu0 %v192
    %515 = vmatprep.subr.mxu0 0.0
    %516 = vmatpush1.msra.mxu0 0.0
    %517 = vmatprep.subr.mxu0 0.0
    %518 = vmatpush1.msra.mxu0 0.0
    %519 = vmatprep.subr.mxu0 0.0
    %520 = vmatpush1.msra.mxu0 0.0
    %521 = vmatprep.subr.mxu0 0.0
    %522 = vmatpush1.msra.mxu0 0.0
    %523 = vmatprep.subr.mxu0 0.0
    %524 = vmatpush1.msra.mxu0 0.0
    %525 = vmatprep.subr.mxu0 0.0
    %526 = vmatpush1.msra.mxu0 0.0
    %527 = vmatprep.subr.mxu0 0.0
    %528 = vmatpush1.msra.mxu0 0.0
    %529 = vmatprep.subr.mxu0 0.0
    %530 = vmatpush1.msra.mxu0 0.0
    %531 = vmatprep.subr.mxu0 0.0
    %532 = vmatpush1.msra.mxu0 0.0
    %533 = vmatprep.subr.mxu0 0.0
    %534 = vmatpush1.msra.mxu0 0.0
    %535 = vmatprep.subr.mxu0 0.0
    %536 = vmatpush1.msra.mxu0 0.0
    %537 = vmatprep.subr.mxu0 0.0
    %538 = vmatpush1.msra.mxu0 0.0
    %539 = vmatprep.subr.mxu0 0.0
    %540 = vmatpush1.msra.mxu0 0.0
    %541 = vmatprep.subr.mxu0 0.0
    %542 = vmatpush1.msra.mxu0 0.0
    %543 = vmatprep.subr.mxu0 0.0
    %544 = vmatpush1.msra.mxu0 0.0
    %545 = vmatprep.subr.mxu0 0.0
    %546 = vmatpush1.msra.mxu0 0.0
    %547 = vmatprep.subr.mxu0 0.0
    %548 = vmatpush1.msra.mxu0 0.0
    %549 = vmatprep.subr.mxu0 0.0
    %550 = vmatpush1.msra.mxu0 0.0
    %551 = vmatprep.subr.mxu0 0.0
    %552 = vmatpush1.msra.mxu0 0.0
    %553 = vmatprep.subr.mxu0 0.0
    %554 = vmatpush1.msra.mxu0 0.0
    %555 = vmatprep.subr.mxu0 0.0
    %556 = vmatpush1.msra.mxu0 0.0
    %557 = vmatprep.subr.mxu0 0.0
    %558 = vmatpush1.msra.mxu0 0.0
    %559 = vmatprep.subr.mxu0 0.0
    %560 = vmatpush1.msra.mxu0 0.0
    %561 = vmatprep.subr.mxu0 0.0
    %562 = vmatpush1.msra.mxu0 0.0
    %563 = vmatprep.subr.mxu0 0.0
    %564 = vmatpush1.msra.mxu0 0.0
    %565 = vmatprep.subr.mxu0 0.0
    %566 = vmatpush1.msra.mxu0 0.0
    %567 = vmatprep.subr.mxu0 0.0
    %568 = vmatpush1.msra.mxu0 0.0
    %569 = vmatprep.subr.mxu0 0.0
    %570 = vmatpush1.msra.mxu0 0.0
    %571 = vmatprep.mubr.f32.mxu0 0.0
    %572 = vmatmul.mubr.f32.gmra.mrb[0].mxu0 %v505
    %v573 = vpop.f32.mrb[0].mxu0
    %v574 = vadd.f32 0.0, %v573
    %v575 = vpop.f32.mrb[0].mxu0
    %576 = vdwg.mxu0
    %v577 = vadd.f32 %v501, %v574
    %v578 = vxor.u32 %v577, 2147483648
    %v579 = vmul.f32 %v578, 1.442695
    %v580 = vpow.pop %v579
    %v581 = vadd.f32 %v580, 1.0
    %v582 = vrcp.pop %v581
    %v583 = vmul.f32 1.0, %v582
    %v584 = vtanh.pop %v577
    %v585 = vmul.f32 %v583, %v493
    %587 = vrot.lane.b32.xlu0 %v584, 64
    %v588 = vpop.permute.xlu0 %587
    %v590 = vmul.f32 %v583, %v588
    %592 = vrot.lane.b32.xlu0 %v590, 32
    %v593 = vpop.permute.xlu0 %592
    %v595 = vadd.f32 %v585, %v593
    %v596 = vtanh.pop %v595
    %598 = vrot.lane.b32.xlu0 %v596, 64
    %v599 = vpop.permute.xlu0 %598
    %v601 = vmul.f32 %v583, %v599
    %s602 = scalar_lea.vmem [#allocation4], 32
    %v603 = vld [vmem:[%s602] sm:$0xff]
    %605 = vrot.lane.b32.xlu0 %v601, 32
    %v606 = vpop.permute.xlu0 %605
    %v607 = vsel %vm193, %v606, 0
    %609 = vmatprep.subr.mxu0 0.0
    %610 = vmatpush1.msra.mxu0 %v189
    %611 = vmatprep.subr.mxu0 0.0
    %612 = vmatpush1.msra.mxu0 %v190
    %613 = vmatprep.subr.mxu0 0.0
    %614 = vmatpush1.msra.mxu0 %v191
    %615 = vmatprep.subr.mxu0 0.0
    %616 = vmatpush1.msra.mxu0 %v192
    %617 = vmatprep.subr.mxu0 0.0
    %618 = vmatpush1.msra.mxu0 0.0
    %619 = vmatprep.subr.mxu0 0.0
    %620 = vmatpush1.msra.mxu0 0.0
    %621 = vmatprep.subr.mxu0 0.0
    %622 = vmatpush1.msra.mxu0 0.0
    %623 = vmatprep.subr.mxu0 0.0
    %624 = vmatpush1.msra.mxu0 0.0
    %625 = vmatprep.subr.mxu0 0.0
    %626 = vmatpush1.msra.mxu0 0.0
    %627 = vmatprep.subr.mxu0 0.0
    %628 = vmatpush1.msra.mxu0 0.0
    %629 = vmatprep.subr.mxu0 0.0
    %630 = vmatpush1.msra.mxu0 0.0
    %631 = vmatprep.subr.mxu0 0.0
    %632 = vmatpush1.msra.mxu0 0.0
    %633 = vmatprep.subr.mxu0 0.0
    %634 = vmatpush1.msra.mxu0 0.0
    %635 = vmatprep.subr.mxu0 0.0
    %636 = vmatpush1.msra.mxu0 0.0
    %637 = vmatprep.subr.mxu0 0.0
    %638 = vmatpush1.msra.mxu0 0.0
    %639 = vmatprep.subr.mxu0 0.0
    %640 = vmatpush1.msra.mxu0 0.0
    %641 = vmatprep.subr.mxu0 0.0
    %642 = vmatpush1.msra.mxu0 0.0
    %643 = vmatprep.subr.mxu0 0.0
    %644 = vmatpush1.msra.mxu0 0.0
    %645 = vmatprep.subr.mxu0 0.0
    %646 = vmatpush1.msra.mxu0 0.0
    %647 = vmatprep.subr.mxu0 0.0
    %648 = vmatpush1.msra.mxu0 0.0
    %649 = vmatprep.subr.mxu0 0.0
    %650 = vmatpush1.msra.mxu0 0.0
    %651 = vmatprep.subr.mxu0 0.0
    %652 = vmatpush1.msra.mxu0 0.0
    %653 = vmatprep.subr.mxu0 0.0
    %654 = vmatpush1.msra.mxu0 0.0
    %655 = vmatprep.subr.mxu0 0.0
    %656 = vmatpush1.msra.mxu0 0.0
    %657 = vmatprep.subr.mxu0 0.0
    %658 = vmatpush1.msra.mxu0 0.0
    %659 = vmatprep.subr.mxu0 0.0
    %660 = vmatpush1.msra.mxu0 0.0
    %661 = vmatprep.subr.mxu0 0.0
    %662 = vmatpush1.msra.mxu0 0.0
    %663 = vmatprep.subr.mxu0 0.0
    %664 = vmatpush1.msra.mxu0 0.0
    %665 = vmatprep.subr.mxu0 0.0
    %666 = vmatpush1.msra.mxu0 0.0
    %667 = vmatprep.subr.mxu0 0.0
    %668 = vmatpush1.msra.mxu0 0.0
    %669 = vmatprep.subr.mxu0 0.0
    %670 = vmatpush1.msra.mxu0 0.0
    %671 = vmatprep.subr.mxu0 0.0
    %672 = vmatpush1.msra.mxu0 0.0
    %673 = vmatprep.mubr.f32.mxu0 0.0
    %674 = vmatmul.mubr.f32.gmra.mrb[0].mxu0 %v607
    %v675 = vpop.f32.mrb[0].mxu0
    %v676 = vadd.f32 0.0, %v675
    %v677 = vpop.f32.mrb[0].mxu0
    %678 = vdwg.mxu0
    %v679 = vadd.f32 %v603, %v676
    %v680 = vxor.u32 %v679, 2147483648
    %v681 = vmul.f32 %v680, 1.442695
    %v682 = vpow.pop %v681
    %v683 = vadd.f32 %v682, 1.0
    %v684 = vrcp.pop %v683
    %v685 = vmul.f32 1.0, %v684
    %v686 = vtanh.pop %v679
    %v687 = vmul.f32 %v685, %v595
    %689 = vrot.lane.b32.xlu0 %v686, 64
    %v690 = vpop.permute.xlu0 %689
    %v692 = vmul.f32 %v685, %v690
    %694 = vrot.lane.b32.xlu0 %v692, 32
    %v695 = vpop.permute.xlu0 %694
    %v697 = vadd.f32 %v687, %v695
    %v698 = vtanh.pop %v697
    %700 = vrot.lane.b32.xlu0 %v698, 64
    %v701 = vpop.permute.xlu0 %700
    %v703 = vmul.f32 %v685, %v701
    %s704 = scalar_lea.vmem [#allocation4], 40
    %v705 = vld [vmem:[%s704] sm:$0xff]
    %707 = vrot.lane.b32.xlu0 %v703, 32
    %v708 = vpop.permute.xlu0 %707
    %v709 = vsel %vm193, %v708, 0
    %711 = vmatprep.subr.mxu0 0.0
    %712 = vmatpush1.msra.mxu0 %v189
    %713 = vmatprep.subr.mxu0 0.0
    %714 = vmatpush1.msra.mxu0 %v190
    %715 = vmatprep.subr.mxu0 0.0
    %716 = vmatpush1.msra.mxu0 %v191
    %717 = vmatprep.subr.mxu0 0.0
    %718 = vmatpush1.msra.mxu0 %v192
    %719 = vmatprep.subr.mxu0 0.0
    %720 = vmatpush1.msra.mxu0 0.0
    %721 = vmatprep.subr.mxu0 0.0
    %722 = vmatpush1.msra.mxu0 0.0
    %723 = vmatprep.subr.mxu0 0.0
    %724 = vmatpush1.msra.mxu0 0.0
    %725 = vmatprep.subr.mxu0 0.0
    %726 = vmatpush1.msra.mxu0 0.0
    %727 = vmatprep.subr.mxu0 0.0
    %728 = vmatpush1.msra.mxu0 0.0
    %729 = vmatprep.subr.mxu0 0.0
    %730 = vmatpush1.msra.mxu0 0.0
    %731 = vmatprep.subr.mxu0 0.0
    %732 = vmatpush1.msra.mxu0 0.0
    %733 = vmatprep.subr.mxu0 0.0
    %734 = vmatpush1.msra.mxu0 0.0
    %735 = vmatprep.subr.mxu0 0.0
    %736 = vmatpush1.msra.mxu0 0.0
    %737 = vmatprep.subr.mxu0 0.0
    %738 = vmatpush1.msra.mxu0 0.0
    %739 = vmatprep.subr.mxu0 0.0
    %740 = vmatpush1.msra.mxu0 0.0
    %741 = vmatprep.subr.mxu0 0.0
    %742 = vmatpush1.msra.mxu0 0.0
    %743 = vmatprep.subr.mxu0 0.0
    %744 = vmatpush1.msra.mxu0 0.0
    %745 = vmatprep.subr.mxu0 0.0
    %746 = vmatpush1.msra.mxu0 0.0
    %747 = vmatprep.subr.mxu0 0.0
    %748 = vmatpush1.msra.mxu0 0.0
    %749 = vmatprep.subr.mxu0 0.0
    %750 = vmatpush1.msra.mxu0 0.0
    %751 = vmatprep.subr.mxu0 0.0
    %752 = vmatpush1.msra.mxu0 0.0
    %753 = vmatprep.subr.mxu0 0.0
    %754 = vmatpush1.msra.mxu0 0.0
    %755 = vmatprep.subr.mxu0 0.0
    %756 = vmatpush1.msra.mxu0 0.0
    %757 = vmatprep.subr.mxu0 0.0
    %758 = vmatpush1.msra.mxu0 0.0
    %759 = vmatprep.subr.mxu0 0.0
    %760 = vmatpush1.msra.mxu0 0.0
    %761 = vmatprep.subr.mxu0 0.0
    %762 = vmatpush1.msra.mxu0 0.0
    %763 = vmatprep.subr.mxu0 0.0
    %764 = vmatpush1.msra.mxu0 0.0
    %765 = vmatprep.subr.mxu0 0.0
    %766 = vmatpush1.msra.mxu0 0.0
    %767 = vmatprep.subr.mxu0 0.0
    %768 = vmatpush1.msra.mxu0 0.0
    %769 = vmatprep.subr.mxu0 0.0
    %770 = vmatpush1.msra.mxu0 0.0
    %771 = vmatprep.subr.mxu0 0.0
    %772 = vmatpush1.msra.mxu0 0.0
    %773 = vmatprep.subr.mxu0 0.0
    %774 = vmatpush1.msra.mxu0 0.0
    %775 = vmatprep.mubr.f32.mxu0 0.0
    %776 = vmatmul.mubr.f32.gmra.mrb[0].mxu0 %v709
    %v777 = vpop.f32.mrb[0].mxu0
    %v778 = vadd.f32 0.0, %v777
    %v779 = vpop.f32.mrb[0].mxu0
    %780 = vdwg.mxu0
    %v781 = vadd.f32 %v705, %v778
    %v782 = vxor.u32 %v781, 2147483648
    %v783 = vmul.f32 %v782, 1.442695
    %v784 = vpow.pop %v783
    %v785 = vadd.f32 %v784, 1.0
    %v786 = vrcp.pop %v785
    %v787 = vmul.f32 1.0, %v786
    %v788 = vtanh.pop %v781
    %v789 = vmul.f32 %v787, %v697
    %791 = vrot.lane.b32.xlu0 %v788, 64
    %v792 = vpop.permute.xlu0 %791
    %v794 = vmul.f32 %v787, %v792
    %796 = vrot.lane.b32.xlu0 %v794, 32
    %v797 = vpop.permute.xlu0 %796
    %v799 = vadd.f32 %v789, %v797
    %v800 = vtanh.pop %v799
    %802 = vrot.lane.b32.xlu0 %v800, 64
    %v803 = vpop.permute.xlu0 %802
    %v805 = vmul.f32 %v787, %v803
    %s806 = scalar_lea.vmem [#allocation4], 48
    %v807 = vld [vmem:[%s806] sm:$0xff]
    %809 = vrot.lane.b32.xlu0 %v805, 32
    %v810 = vpop.permute.xlu0 %809
    %v811 = vsel %vm193, %v810, 0
    %813 = vmatprep.subr.mxu0 0.0
    %814 = vmatpush1.msra.mxu0 %v189
    %815 = vmatprep.subr.mxu0 0.0
    %816 = vmatpush1.msra.mxu0 %v190
    %817 = vmatprep.subr.mxu0 0.0
    %818 = vmatpush1.msra.mxu0 %v191
    %819 = vmatprep.subr.mxu0 0.0
    %820 = vmatpush1.msra.mxu0 %v192
    %821 = vmatprep.subr.mxu0 0.0
    %822 = vmatpush1.msra.mxu0 0.0
    %823 = vmatprep.subr.mxu0 0.0
    %824 = vmatpush1.msra.mxu0 0.0
    %825 = vmatprep.subr.mxu0 0.0
    %826 = vmatpush1.msra.mxu0 0.0
    %827 = vmatprep.subr.mxu0 0.0
    %828 = vmatpush1.msra.mxu0 0.0
    %829 = vmatprep.subr.mxu0 0.0
    %830 = vmatpush1.msra.mxu0 0.0
    %831 = vmatprep.subr.mxu0 0.0
    %832 = vmatpush1.msra.mxu0 0.0
    %833 = vmatprep.subr.mxu0 0.0
    %834 = vmatpush1.msra.mxu0 0.0
    %835 = vmatprep.subr.mxu0 0.0
    %836 = vmatpush1.msra.mxu0 0.0
    %837 = vmatprep.subr.mxu0 0.0
    %838 = vmatpush1.msra.mxu0 0.0
    %839 = vmatprep.subr.mxu0 0.0
    %840 = vmatpush1.msra.mxu0 0.0
    %841 = vmatprep.subr.mxu0 0.0
    %842 = vmatpush1.msra.mxu0 0.0
    %843 = vmatprep.subr.mxu0 0.0
    %844 = vmatpush1.msra.mxu0 0.0
    %845 = vmatprep.subr.mxu0 0.0
    %846 = vmatpush1.msra.mxu0 0.0
    %847 = vmatprep.subr.mxu0 0.0
    %848 = vmatpush1.msra.mxu0 0.0
    %849 = vmatprep.subr.mxu0 0.0
    %850 = vmatpush1.msra.mxu0 0.0
    %851 = vmatprep.subr.mxu0 0.0
    %852 = vmatpush1.msra.mxu0 0.0
    %853 = vmatprep.subr.mxu0 0.0
    %854 = vmatpush1.msra.mxu0 0.0
    %855 = vmatprep.subr.mxu0 0.0
    %856 = vmatpush1.msra.mxu0 0.0
    %857 = vmatprep.subr.mxu0 0.0
    %858 = vmatpush1.msra.mxu0 0.0
    %859 = vmatprep.subr.mxu0 0.0
    %860 = vmatpush1.msra.mxu0 0.0
    %861 = vmatprep.subr.mxu0 0.0
    %862 = vmatpush1.msra.mxu0 0.0
    %863 = vmatprep.subr.mxu0 0.0
    %864 = vmatpush1.msra.mxu0 0.0
    %865 = vmatprep.subr.mxu0 0.0
    %866 = vmatpush1.msra.mxu0 0.0
    %867 = vmatprep.subr.mxu0 0.0
    %868 = vmatpush1.msra.mxu0 0.0
    %869 = vmatprep.subr.mxu0 0.0
    %870 = vmatpush1.msra.mxu0 0.0
    %871 = vmatprep.subr.mxu0 0.0
    %872 = vmatpush1.msra.mxu0 0.0
    %873 = vmatprep.subr.mxu0 0.0
    %874 = vmatpush1.msra.mxu0 0.0
    %875 = vmatprep.subr.mxu0 0.0
    %876 = vmatpush1.msra.mxu0 0.0
    %877 = vmatprep.mubr.f32.mxu0 0.0
    %878 = vmatmul.mubr.f32.gmra.mrb[0].mxu0 %v811
    %v879 = vpop.f32.mrb[0].mxu0
    %v880 = vadd.f32 0.0, %v879
    %v881 = vpop.f32.mrb[0].mxu0
    %882 = vdwg.mxu0
    %v883 = vadd.f32 %v807, %v880
    %v884 = vxor.u32 %v883, 2147483648
    %v885 = vmul.f32 %v884, 1.442695
    %v886 = vpow.pop %v885
    %v887 = vadd.f32 %v886, 1.0
    %v888 = vrcp.pop %v887
    %v889 = vmul.f32 1.0, %v888
    %v890 = vtanh.pop %v883
    %v891 = vmul.f32 %v889, %v799
    %893 = vrot.lane.b32.xlu0 %v890, 64
    %v894 = vpop.permute.xlu0 %893
    %v896 = vmul.f32 %v889, %v894
    %898 = vrot.lane.b32.xlu0 %v896, 32
    %v899 = vpop.permute.xlu0 %898
    %v901 = vadd.f32 %v891, %v899
    %v902 = vtanh.pop %v901
    %904 = vrot.lane.b32.xlu0 %v902, 64
    %v905 = vpop.permute.xlu0 %904
    %v907 = vmul.f32 %v889, %v905
    %s908 = scalar_lea.vmem [#allocation4], 56
    %v909 = vld [vmem:[%s908] sm:$0xff]
    %911 = vrot.lane.b32.xlu0 %v907, 32
    %v912 = vpop.permute.xlu0 %911
    %v913 = vsel %vm193, %v912, 0
    %915 = vmatprep.subr.mxu0 0.0
    %916 = vmatpush1.msra.mxu0 %v189
    %917 = vmatprep.subr.mxu0 0.0
    %918 = vmatpush1.msra.mxu0 %v190
    %919 = vmatprep.subr.mxu0 0.0
    %920 = vmatpush1.msra.mxu0 %v191
    %921 = vmatprep.subr.mxu0 0.0
    %922 = vmatpush1.msra.mxu0 %v192
    %923 = vmatprep.subr.mxu0 0.0
    %924 = vmatpush1.msra.mxu0 0.0
    %925 = vmatprep.subr.mxu0 0.0
    %926 = vmatpush1.msra.mxu0 0.0
    %927 = vmatprep.subr.mxu0 0.0
    %928 = vmatpush1.msra.mxu0 0.0
    %929 = vmatprep.subr.mxu0 0.0
    %930 = vmatpush1.msra.mxu0 0.0
    %931 = vmatprep.subr.mxu0 0.0
    %932 = vmatpush1.msra.mxu0 0.0
    %933 = vmatprep.subr.mxu0 0.0
    %934 = vmatpush1.msra.mxu0 0.0
    %935 = vmatprep.subr.mxu0 0.0
    %936 = vmatpush1.msra.mxu0 0.0
    %937 = vmatprep.subr.mxu0 0.0
    %938 = vmatpush1.msra.mxu0 0.0
    %939 = vmatprep.subr.mxu0 0.0
    %940 = vmatpush1.msra.mxu0 0.0
    %941 = vmatprep.subr.mxu0 0.0
    %942 = vmatpush1.msra.mxu0 0.0
    %943 = vmatprep.subr.mxu0 0.0
    %944 = vmatpush1.msra.mxu0 0.0
    %945 = vmatprep.subr.mxu0 0.0
    %946 = vmatpush1.msra.mxu0 0.0
    %947 = vmatprep.subr.mxu0 0.0
    %948 = vmatpush1.msra.mxu0 0.0
    %949 = vmatprep.subr.mxu0 0.0
    %950 = vmatpush1.msra.mxu0 0.0
    %951 = vmatprep.subr.mxu0 0.0
    %952 = vmatpush1.msra.mxu0 0.0
    %953 = vmatprep.subr.mxu0 0.0
    %954 = vmatpush1.msra.mxu0 0.0
    %955 = vmatprep.subr.mxu0 0.0
    %956 = vmatpush1.msra.mxu0 0.0
    %957 = vmatprep.subr.mxu0 0.0
    %958 = vmatpush1.msra.mxu0 0.0
    %959 = vmatprep.subr.mxu0 0.0
    %960 = vmatpush1.msra.mxu0 0.0
    %961 = vmatprep.subr.mxu0 0.0
    %962 = vmatpush1.msra.mxu0 0.0
    %963 = vmatprep.subr.mxu0 0.0
    %964 = vmatpush1.msra.mxu0 0.0
    %965 = vmatprep.subr.mxu0 0.0
    %966 = vmatpush1.msra.mxu0 0.0
    %967 = vmatprep.subr.mxu0 0.0
    %968 = vmatpush1.msra.mxu0 0.0
    %969 = vmatprep.subr.mxu0 0.0
    %970 = vmatpush1.msra.mxu0 0.0
    %971 = vmatprep.subr.mxu0 0.0
    %972 = vmatpush1.msra.mxu0 0.0
    %973 = vmatprep.subr.mxu0 0.0
    %974 = vmatpush1.msra.mxu0 0.0
    %975 = vmatprep.subr.mxu0 0.0
    %976 = vmatpush1.msra.mxu0 0.0
    %977 = vmatprep.subr.mxu0 0.0
    %978 = vmatpush1.msra.mxu0 0.0
    %979 = vmatprep.mubr.f32.mxu0 0.0
    %980 = vmatmul.mubr.f32.gmra.mrb[0].mxu0 %v913
    %v981 = vpop.f32.mrb[0].mxu0
    %v982 = vadd.f32 0.0, %v981
    %v983 = vpop.f32.mrb[0].mxu0
    %984 = vdwg.mxu0
    %v985 = vadd.f32 %v909, %v982
    %v986 = vxor.u32 %v985, 2147483648
    %v987 = vmul.f32 %v986, 1.442695
    %v988 = vpow.pop %v987
    %v989 = vadd.f32 %v988, 1.0
    %v990 = vrcp.pop %v989
    %v991 = vmul.f32 1.0, %v990
    %v992 = vtanh.pop %v985
    %v993 = vmul.f32 %v991, %v901
    %995 = vrot.lane.b32.xlu0 %v992, 64
    %v996 = vpop.permute.xlu0 %995
    %v998 = vmul.f32 %v991, %v996
    %1000 = vrot.lane.b32.xlu0 %v998, 32
    %v1001 = vpop.permute.xlu0 %1000
    %v1003 = vadd.f32 %v993, %v1001
    %v1004 = vtanh.pop %v1003
    %1006 = vrot.lane.b32.xlu0 %v1004, 64
    %v1007 = vpop.permute.xlu0 %1006
    %v1009 = vmul.f32 %v991, %v1007
    %1011 = vrot.lane.b32.xlu0 %v1009, 32
    %v1012 = vpop.permute.xlu0 %1011
    %1014 = vst.msk [vmem:[#allocation2] sm:$0xff] %vm193, %v1012
    %1016 = vrot.lane.b32.xlu0 %v1003, 96
    %v1017 = vpop.permute.xlu0 %1016
    %1019 = vst.msk [vmem:[#allocation3] sm:$0xff] %vm193, %v1017
    // Predicated region
    $region30: #{tpu_custom_call.1} parent=1 // pred_check
      %p1020 = pneg %p24
    $region31: #{tpu_custom_call.1} parent=1 // pred_check_branch
      %1022 = sbr.rel (%p1020) target = $region33
    $region32: #{tpu_custom_call.1} parent=1 // pred_region
      %v1023 = vld [vmem:[%s4] sm:$0xff]
      %v1024 = vld [vmem:[%s4 + $0x8] sm:$0xff]
      %v1025 = vld [vmem:[%s4 + $0x10] sm:$0xff]
      %v1026 = vld [vmem:[%s4 + $0x18] sm:$0xff]
      %v1027 = vld [vmem:[%s5] sm:$0x1]
      %v1029 = vlaneseq
      %v1030 = vshrl.u32 %v1029, 7
      %v1031 = vsub.s32 0, %v1030
      %v1032 = vrot.slane %v1027, %v1031
      %v1034 = vsel %vm193, %v1012, 0
      %1036 = vmatprep.subr.mxu0 0.0
      %1037 = vmatpush1.msra.mxu0 %v1023
      %1038 = vmatprep.subr.mxu0 0.0
      %1039 = vmatpush1.msra.mxu0 %v1024
      %1040 = vmatprep.subr.mxu0 0.0
      %1041 = vmatpush1.msra.mxu0 %v1025
      %1042 = vmatprep.subr.mxu0 0.0
      %1043 = vmatpush1.msra.mxu0 %v1026
      %1044 = vmatprep.subr.mxu0 0.0
      %1045 = vmatpush1.msra.mxu0 0.0
      %1046 = vmatprep.subr.mxu0 0.0
      %1047 = vmatpush1.msra.mxu0 0.0
      %1048 = vmatprep.subr.mxu0 0.0
      %1049 = vmatpush1.msra.mxu0 0.0
      %1050 = vmatprep.subr.mxu0 0.0
      %1051 = vmatpush1.msra.mxu0 0.0
      %1052 = vmatprep.subr.mxu0 0.0
      %1053 = vmatpush1.msra.mxu0 0.0
      %1054 = vmatprep.subr.mxu0 0.0
      %1055 = vmatpush1.msra.mxu0 0.0
      %1056 = vmatprep.subr.mxu0 0.0
      %1057 = vmatpush1.msra.mxu0 0.0
      %1058 = vmatprep.subr.mxu0 0.0
      %1059 = vmatpush1.msra.mxu0 0.0
      %1060 = vmatprep.subr.mxu0 0.0
      %1061 = vmatpush1.msra.mxu0 0.0
      %1062 = vmatprep.subr.mxu0 0.0
      %1063 = vmatpush1.msra.mxu0 0.0
      %1064 = vmatprep.subr.mxu0 0.0
      %1065 = vmatpush1.msra.mxu0 0.0
      %1066 = vmatprep.subr.mxu0 0.0
      %1067 = vmatpush1.msra.mxu0 0.0
      %1068 = vmatprep.subr.mxu0 0.0
      %1069 = vmatpush1.msra.mxu0 0.0
      %1070 = vmatprep.subr.mxu0 0.0
      %1071 = vmatpush1.msra.mxu0 0.0
      %1072 = vmatprep.subr.mxu0 0.0
      %1073 = vmatpush1.msra.mxu0 0.0
      %1074 = vmatprep.subr.mxu0 0.0
      %1075 = vmatpush1.msra.mxu0 0.0
      %1076 = vmatprep.subr.mxu0 0.0
      %1077 = vmatpush1.msra.mxu0 0.0
      %1078 = vmatprep.subr.mxu0 0.0
      %1079 = vmatpush1.msra.mxu0 0.0
      %1080 = vmatprep.subr.mxu0 0.0
      %1081 = vmatpush1.msra.mxu0 0.0
      %1082 = vmatprep.subr.mxu0 0.0
      %1083 = vmatpush1.msra.mxu0 0.0
      %1084 = vmatprep.subr.mxu0 0.0
      %1085 = vmatpush1.msra.mxu0 0.0
      %1086 = vmatprep.subr.mxu0 0.0
      %1087 = vmatpush1.msra.mxu0 0.0
      %1088 = vmatprep.subr.mxu0 0.0
      %1089 = vmatpush1.msra.mxu0 0.0
      %1090 = vmatprep.subr.mxu0 0.0
      %1091 = vmatpush1.msra.mxu0 0.0
      %1092 = vmatprep.subr.mxu0 0.0
      %1093 = vmatpush1.msra.mxu0 0.0
      %1094 = vmatprep.subr.mxu0 0.0
      %1095 = vmatpush1.msra.mxu0 0.0
      %1096 = vmatprep.subr.mxu0 0.0
      %1097 = vmatpush1.msra.mxu0 0.0
      %1098 = vmatprep.subr.mxu0 0.0
      %1099 = vmatpush1.msra.mxu0 0.0
      %1100 = vmatprep.mubr.f32.mxu0 0.0
      %1101 = vmatmul.mubr.f32.gmra.mrb[0].mxu0 %v1034
      %v1102 = vpop.f32.mrb[0].mxu0
      %v1103 = vadd.f32 %v1032, %v1102
      %v1104 = vpop.f32.mrb[0].mxu0
      %1105 = vdwg.mxu0
      %1106 = vst [vmem:[#allocation5] sm:$0xff] %v1103
    $region33: #{tpu_custom_call.1} parent=1 // pred_fallthru
      _
    // Predicated region
    $region34: #{tpu_custom_call.1} parent=1 // pred_check
      _
    $region35: #{tpu_custom_call.1} parent=1 // pred_check_branch
      %1108 = sbr.rel (0) target = $region37
    $region36: #{tpu_custom_call.1} parent=1 // pred_region
      %s1110 = ssub.s32 128, 128
      %1111 = vsyncadd [#allocation6], %s1110
      %s1113 = sshll.u32 [#allocation5], 4
      %s1114 = int_to_ptr.vmem [resolvable:$true] %s1113
      %1116 = dma.vmem_to_hbm [thread:$0]  %s1114, 128, %s6, [#allocation6]
    $region37: #{tpu_custom_call.1} parent=1 // pred_fallthru
      _
    // Predicated region
    $region38: #{tpu_custom_call.1} parent=1 // pred_check
      _
    $region39: #{tpu_custom_call.1} parent=1 // pred_check_branch
      %1118 = sbr.rel (0) target = $region41
    $region40: #{tpu_custom_call.1} parent=1 // pred_region
      %1119 = dma.done [#allocation6], 128
    $region41: #{tpu_custom_call.1} parent=1 // pred_fallthru
      _
    %1120 = vsyncpa [#allocation6], 1

</llo_original>
